<compile_context>
chip_gen: v6e
topology: v6e:2x2x1
jax: 0.10.0
libtpu: 0.0.40
codegen_flags: <defaults>
</compile_context>

<pallas_src>
import jax
import jax.numpy as jnp
from jax import lax
from jax.experimental import pallas as pl
from jax.experimental.pallas import tpu as pltpu

_LANE = 128


def _round_up(x, m):
    return (x + m - 1) // m * m


def _pad_last(a, target):
    pad = target - a.shape[-1]
    if pad == 0:
        return a
    widths = [(0, 0)] * (a.ndim - 1) + [(0, pad)]
    return jnp.pad(a, widths)


def _pad_axis(a, axis, target):
    pad = target - a.shape[axis]
    if pad == 0:
        return a
    widths = [(0, 0)] * a.ndim
    widths[axis] = (0, pad)
    return jnp.pad(a, widths)


# ----------------------------------------------------------------------------
# Fused bottleneck kernel: one grid step == one image (NHWC, lane = channels).
# ----------------------------------------------------------------------------
def _bottleneck_kernel(x_ref, w1_ref, b1_ref, w2_ref, b2_ref,
                       w3_ref, b3_ref, ws_ref, bs_ref, o_ref, t1p_ref):
    # x_ref:  (1, H, W, Cin_p)       input image tile
    # w*_ref: BN-folded weights; b*_ref: (1, C) biases
    # o_ref:  (1, H, W, Cout_p)
    # t1p_ref: VMEM scratch (H+2, W+2, Cmid_p) -- zero-padded conv1 output (halo)
    _, H, W, Cin_p = x_ref.shape
    Cmid_p = w1_ref.shape[1]
    M = H * W

    x2d = x_ref[0].reshape(M, Cin_p)

    # conv1 (1x1) + folded BN1 + ReLU -> zero-padded VMEM scratch (no HBM trip).
    t1 = jnp.dot(x2d, w1_ref[...], preferred_element_type=jnp.float32) + b1_ref[...]
    t1 = jnp.maximum(t1, 0.0)
    t1p_ref[...] = jnp.zeros_like(t1p_ref)
    t1p_ref[1:H + 1, 1:W + 1, :] = t1.reshape(H, W, Cmid_p)

    # projection shortcut (1x1) + folded BN, reusing the resident x tile.
    sc = jnp.dot(x2d, ws_ref[...], preferred_element_type=jnp.float32) + bs_ref[...]

    # conv2 (3x3, stride 1, pad 1, groups 1) as 9 shifted-window matmuls
    # over the padded VMEM scratch.
    acc = jnp.zeros((M, Cmid_p), jnp.float32)
    for kh in range(3):
        for kw in range(3):
            win = t1p_ref[kh:kh + H, kw:kw + W, :].reshape(M, Cmid_p)
            acc = acc + jnp.dot(win, w2_ref[kh * 3 + kw],
                                preferred_element_type=jnp.float32)
    t2 = jnp.maximum(acc + b2_ref[...], 0.0)          # folded BN2 + ReLU

    # conv3 (1x1) + folded BN3 + residual add + ReLU -> single lane-dense store.
    t3 = jnp.dot(t2, w3_ref[...], preferred_element_type=jnp.float32) + b3_ref[...]
    out = jnp.maximum(t3 + sc, 0.0)
    o_ref[...] = out.reshape(1, H, W, -1).astype(o_ref.dtype)


# ----------------------------------------------------------------------------
# Full BottleneckBlock forward (stride=1, num_groups=1, dilation=1, frozen BN)
# ----------------------------------------------------------------------------
@jax.jit
def bottleneck_forward(x_nchw, p):
    N, Cin, H, W = x_nchw.shape
    Cmid = p["w1"].shape[1]
    Cout = p["w3"].shape[1]

    Cin_p = _round_up(Cin, _LANE)
    Cmid_p = _round_up(Cmid, _LANE)
    Cout_p = _round_up(Cout, _LANE)

    # Fold BN scales into conv output channels; zero-pad channels to lane multiples.
    w1 = _pad_axis(_pad_last(p["w1"] * p["s1"], Cmid_p), 0, Cin_p)
    b1 = _pad_last(p["b1"], Cmid_p)
    w2 = _pad_axis(_pad_last(p["w2"] * p["s2"][None], Cmid_p), 1, Cmid_p)
    b2 = _pad_last(p["b2"], Cmid_p)
    w3 = _pad_axis(_pad_last(p["w3"] * p["s3"], Cout_p), 0, Cmid_p)
    b3 = _pad_last(p["b3"], Cout_p)
    ws = _pad_axis(_pad_last(p["ws"] * p["ss"], Cout_p), 0, Cin_p)
    bs = _pad_last(p["bs"], Cout_p)

    x_nhwc = jnp.transpose(x_nchw, (0, 2, 3, 1))
    x_p = _pad_last(x_nhwc, Cin_p)

    out = pl.pallas_call(
        _bottleneck_kernel,
        out_shape=jax.ShapeDtypeStruct((N, H, W, Cout_p), jnp.float32),
        grid=(N,),
        in_specs=[
            pl.BlockSpec((1, H, W, Cin_p), lambda n: (n, 0, 0, 0)),
            pl.BlockSpec((Cin_p, Cmid_p), lambda n: (0, 0)),
            pl.BlockSpec((1, Cmid_p), lambda n: (0, 0)),
            pl.BlockSpec((9, Cmid_p, Cmid_p), lambda n: (0, 0, 0)),
            pl.BlockSpec((1, Cmid_p), lambda n: (0, 0)),
            pl.BlockSpec((Cmid_p, Cout_p), lambda n: (0, 0)),
            pl.BlockSpec((1, Cout_p), lambda n: (0, 0)),
            pl.BlockSpec((Cin_p, Cout_p), lambda n: (0, 0)),
            pl.BlockSpec((1, Cout_p), lambda n: (0, 0)),
        ],
        out_specs=pl.BlockSpec((1, H, W, Cout_p), lambda n: (n, 0, 0, 0)),
        scratch_shapes=[pltpu.VMEM((H + 2, W + 2, Cmid_p), jnp.float32)],
        compiler_params=pltpu.CompilerParams(
            dimension_semantics=("parallel",)),
    )(x_p, w1, b1, w2, b2, w3, b3, ws, bs)

    out = out[..., :Cout]
    return jnp.transpose(out, (0, 3, 1, 2))  # back to NCHW


# ----------------------------------------------------------------------------
# Pure-JAX reference (lax.conv, default precision) for correctness checking
# ----------------------------------------------------------------------------
def reference_forward(x_nchw, p):
    dn = ("NHWC", "HWIO", "NHWC")

    def bn(y, s, b):
        return y * s.reshape(1, 1, 1, -1) + b.reshape(1, 1, 1, -1)

    x = jnp.transpose(x_nchw, (0, 2, 3, 1))
    w1 = p["w1"][None, None]
    w2 = p["w2"].reshape(3, 3, p["w2"].shape[1], p["w2"].shape[2])
    w3 = p["w3"][None, None]
    ws = p["ws"][None, None]

    t = lax.conv_general_dilated(x, w1, (1, 1), "VALID", dimension_numbers=dn)
    t = jax.nn.relu(bn(t, p["s1"], p["b1"]))
    t = lax.conv_general_dilated(t, w2, (1, 1), ((1, 1), (1, 1)), dimension_numbers=dn)
    t = jax.nn.relu(bn(t, p["s2"], p["b2"]))
    t = lax.conv_general_dilated(t, w3, (1, 1), "VALID", dimension_numbers=dn)
    t = bn(t, p["s3"], p["b3"])
    sc = lax.conv_general_dilated(x, ws, (1, 1), "VALID", dimension_numbers=dn)
    sc = bn(sc, p["ss"], p["bs"])
    out = jax.nn.relu(t + sc)
    return jnp.transpose(out, (0, 3, 1, 2))


# ----------------------------------------------------------------------------
# Deterministic parameter construction (shapes per BottleneckBlock.__init__)
# ----------------------------------------------------------------------------
def make_params(key, Cin, Cmid, Cout, eps=1e-5):
    ks = jax.random.split(key, 20)

    def bn_fold(k0, k1, k2, k3, C):
        mean = 0.1 * jax.random.normal(k0, (C,), jnp.float32)
        var = jax.random.uniform(k1, (C,), jnp.float32, minval=0.5, maxval=1.5)
        gamma = 1.0 + 0.1 * jax.random.normal(k2, (C,), jnp.float32)
        beta = 0.1 * jax.random.normal(k3, (C,), jnp.float32)
        scale = gamma * lax.rsqrt(var + eps)
        bias = beta - mean * scale
        return scale.reshape(1, C), bias.reshape(1, C)

    p = {}
    p["w1"] = 0.1 * jax.random.normal(ks[0], (Cin, Cmid), jnp.float32)       # conv1 1x1
    p["w2"] = 0.1 * jax.random.normal(ks[1], (9, Cmid, Cmid), jnp.float32)   # conv2 3x3 (tap-major HWIO)
    p["w3"] = 0.1 * jax.random.normal(ks[2], (Cmid, Cout), jnp.float32)      # conv3 1x1
    p["ws"] = 0.1 * jax.random.normal(ks[3], (Cin, Cout), jnp.float32)       # shortcut 1x1
    p["s1"], p["b1"] = bn_fold(ks[4], ks[5], ks[6], ks[7], Cmid)
    p["s2"], p["b2"] = bn_fold(ks[8], ks[9], ks[10], ks[11], Cmid)
    p["s3"], p["b3"] = bn_fold(ks[12], ks[13], ks[14], ks[15], Cout)
    p["ss"], p["bs"] = bn_fold(ks[16], ks[17], ks[18], ks[19], Cout)
    return p


if __name__ == "__main__":
    # Small BottleneckBlock: in_channels=16, bottleneck_channels=8, out_channels=32,
    # stride=1, num_groups=1, dilation=1, norm='BN' (frozen/eval).
    N, Cin, Cmid, Cout, H, W = 2, 16, 8, 32, 8, 8

    key = jax.random.PRNGKey(0)
    kx, kp = jax.random.split(key)
    x = jax.random.normal(kx, (N, Cin, H, W), jnp.float32)   # NCHW, like PyTorch
    params = make_params(kp, Cin, Cmid, Cout)

    out = jax.block_until_ready(bottleneck_forward(x, params))
    ref = jax.block_until_ready(reference_forward(x, params))

    assert out.shape == (N, Cout, H, W), out.shape
    max_err = float(jnp.max(jnp.abs(out - ref)))
    # Default (single-pass bf16 MXU) precision in both kernel and reference.
    assert max_err < 5e-2, f"mismatch vs reference: max abs err {max_err}"

    print("KERNEL_OK")
</pallas_src>

<mosaic_0001>
module attributes {stable_mosaic.version = 11 : i64} {
  func.func @_bottleneck_kernel(%arg0: i32, %arg1: memref<1x8x8x128xf32, #tpu.memory_space<vmem>>, %arg2: memref<128x128xf32, #tpu.memory_space<vmem>>, %arg3: memref<1x128xf32, #tpu.memory_space<vmem>>, %arg4: memref<9x128x128xf32, #tpu.memory_space<vmem>>, %arg5: memref<1x128xf32, #tpu.memory_space<vmem>>, %arg6: memref<128x128xf32, #tpu.memory_space<vmem>>, %arg7: memref<1x128xf32, #tpu.memory_space<vmem>>, %arg8: memref<128x128xf32, #tpu.memory_space<vmem>>, %arg9: memref<1x128xf32, #tpu.memory_space<vmem>>, %arg10: memref<1x8x8x128xf32, #tpu.memory_space<vmem>>, %arg11: memref<10x10x128xf32, #tpu.memory_space<vmem>>) attributes {dimension_semantics = [#tpu.dimension_semantics<parallel>], iteration_bounds = array<i64: 2>, scalar_prefetch = 0 : i64, scratch_operands = 1 : i64, tpu.core_type = #tpu.core_type<tc>, window_params = [{transform_indices = @transform_0, window_bounds = array<i64: 1, 8, 8, 128>}, {pipeline_mode = #tpu.pipeline_mode<synchronous>, transform_indices = @transform_1, window_bounds = array<i64: 128, 128>}, {pipeline_mode = #tpu.pipeline_mode<synchronous>, transform_indices = @transform_2, window_bounds = array<i64: 1, 128>}, {pipeline_mode = #tpu.pipeline_mode<synchronous>, transform_indices = @transform_3, window_bounds = array<i64: 9, 128, 128>}, {pipeline_mode = #tpu.pipeline_mode<synchronous>, transform_indices = @transform_4, window_bounds = array<i64: 1, 128>}, {pipeline_mode = #tpu.pipeline_mode<synchronous>, transform_indices = @transform_5, window_bounds = array<i64: 128, 128>}, {pipeline_mode = #tpu.pipeline_mode<synchronous>, transform_indices = @transform_6, window_bounds = array<i64: 1, 128>}, {pipeline_mode = #tpu.pipeline_mode<synchronous>, transform_indices = @transform_7, window_bounds = array<i64: 128, 128>}, {pipeline_mode = #tpu.pipeline_mode<synchronous>, transform_indices = @transform_8, window_bounds = array<i64: 1, 128>}, {transform_indices = @transform_9, window_bounds = array<i64: 1, 8, 8, 128>}]} {
    %c0 = arith.constant 0 : index
    %c0_0 = arith.constant 0 : index
    %c0_1 = arith.constant 0 : index
    %c0_2 = arith.constant 0 : index
    %0 = vector.load %arg1[%c0, %c0_0, %c0_1, %c0_2] : memref<1x8x8x128xf32, #tpu.memory_space<vmem>>, vector<1x8x8x128xf32>
    %1 = vector.shape_cast %0 : vector<1x8x8x128xf32> to vector<8x8x128xf32>
    %2 = vector.shape_cast %1 : vector<8x8x128xf32> to vector<64x128xf32>
    %c0_3 = arith.constant 0 : index
    %c0_4 = arith.constant 0 : index
    %3 = vector.load %arg2[%c0_3, %c0_4] : memref<128x128xf32, #tpu.memory_space<vmem>>, vector<128x128xf32>
    %cst = arith.constant dense<0.000000e+00> : vector<64x128xf32>
    %4 = tpu.matmul %2, %3, %cst {dimension_numbers = #tpu.dot_dimension_numbers<[1], [0], [0], [1], [0, 0, 1, 1], [], []>} : vector<64x128xf32>, vector<128x128xf32>, vector<64x128xf32> -> vector<64x128xf32>
    %c0_5 = arith.constant 0 : index
    %c0_6 = arith.constant 0 : index
    %5 = vector.load %arg3[%c0_5, %c0_6] : memref<1x128xf32, #tpu.memory_space<vmem>>, vector<1x128xf32>
    %6 = vector.broadcast %5 : vector<1x128xf32> to vector<64x128xf32>
    %7 = arith.addf %4, %6 : vector<64x128xf32>
    %cst_7 = arith.constant 0.000000e+00 : f32
    %8 = vector.broadcast %cst_7 : f32 to vector<64x128xf32>
    %9 = arith.maximumf %7, %8 : vector<64x128xf32>
    %cst_8 = arith.constant 0.000000e+00 : f32
    %10 = vector.broadcast %cst_8 : f32 to vector<10x10x128xf32>
    %c0_9 = arith.constant 0 : index
    %c0_10 = arith.constant 0 : index
    %c0_11 = arith.constant 0 : index
    %11 = vector.load %arg11[%c0_9, %c0_10, %c0_11] : memref<10x10x128xf32, #tpu.memory_space<vmem>>, vector<10x10x128xf32>
    tpu.vector_store %arg11[%c0_9, %c0_10, %c0_11], %10 {strides = array<i32>} : memref<10x10x128xf32, #tpu.memory_space<vmem>>, vector<10x10x128xf32>,
    %12 = vector.shape_cast %9 : vector<64x128xf32> to vector<8x8x128xf32>
    %c1 = arith.constant 1 : index
    %c1_12 = arith.constant 1 : index
    %c0_13 = arith.constant 0 : index
    %13 = vector.load %arg11[%c1, %c1_12, %c0_13] : memref<10x10x128xf32, #tpu.memory_space<vmem>>, vector<8x8x128xf32>
    tpu.vector_store %arg11[%c1, %c1_12, %c0_13], %12 {strides = array<i32>} : memref<10x10x128xf32, #tpu.memory_space<vmem>>, vector<8x8x128xf32>,
    %c0_14 = arith.constant 0 : index
    %c0_15 = arith.constant 0 : index
    %14 = vector.load %arg8[%c0_14, %c0_15] : memref<128x128xf32, #tpu.memory_space<vmem>>, vector<128x128xf32>
    %cst_16 = arith.constant dense<0.000000e+00> : vector<64x128xf32>
    %15 = tpu.matmul %2, %14, %cst_16 {dimension_numbers = #tpu.dot_dimension_numbers<[1], [0], [0], [1], [0, 0, 1, 1], [], []>} : vector<64x128xf32>, vector<128x128xf32>, vector<64x128xf32> -> vector<64x128xf32>
    %c0_17 = arith.constant 0 : index
    %c0_18 = arith.constant 0 : index
    %16 = vector.load %arg9[%c0_17, %c0_18] : memref<1x128xf32, #tpu.memory_space<vmem>>, vector<1x128xf32>
    %17 = vector.broadcast %16 : vector<1x128xf32> to vector<64x128xf32>
    %18 = arith.addf %15, %17 : vector<64x128xf32>
    %cst_19 = arith.constant 0.000000e+00 : f32
    %19 = vector.broadcast %cst_19 : f32 to vector<64x128xf32>
    %c0_20 = arith.constant 0 : index
    %c0_21 = arith.constant 0 : index
    %c0_22 = arith.constant 0 : index
    %20 = vector.load %arg11[%c0_20, %c0_21, %c0_22] : memref<10x10x128xf32, #tpu.memory_space<vmem>>, vector<8x8x128xf32>
    %21 = vector.shape_cast %20 : vector<8x8x128xf32> to vector<64x128xf32>
    %c0_23 = arith.constant 0 : index
    %c0_24 = arith.constant 0 : index
    %c0_25 = arith.constant 0 : index
    %22 = vector.load %arg4[%c0_23, %c0_24, %c0_25] : memref<9x128x128xf32, #tpu.memory_space<vmem>>, vector<1x128x128xf32>
    %23 = vector.shape_cast %22 : vector<1x128x128xf32> to vector<128x128xf32>
    %cst_26 = arith.constant dense<0.000000e+00> : vector<64x128xf32>
    %24 = tpu.matmul %21, %23, %cst_26 {dimension_numbers = #tpu.dot_dimension_numbers<[1], [0], [0], [1], [0, 0, 1, 1], [], []>} : vector<64x128xf32>, vector<128x128xf32>, vector<64x128xf32> -> vector<64x128xf32>
    %25 = arith.addf %19, %24 : vector<64x128xf32>
    %c0_27 = arith.constant 0 : index
    %c1_28 = arith.constant 1 : index
    %c0_29 = arith.constant 0 : index
    %26 = vector.load %arg11[%c0_27, %c1_28, %c0_29] : memref<10x10x128xf32, #tpu.memory_space<vmem>>, vector<8x8x128xf32>
    %27 = vector.shape_cast %26 : vector<8x8x128xf32> to vector<64x128xf32>
    %c1_30 = arith.constant 1 : index
    %c0_31 = arith.constant 0 : index
    %c0_32 = arith.constant 0 : index
    %28 = vector.load %arg4[%c1_30, %c0_31, %c0_32] : memref<9x128x128xf32, #tpu.memory_space<vmem>>, vector<1x128x128xf32>
    %29 = vector.shape_cast %28 : vector<1x128x128xf32> to vector<128x128xf32>
    %cst_33 = arith.constant dense<0.000000e+00> : vector<64x128xf32>
    %30 = tpu.matmul %27, %29, %cst_33 {dimension_numbers = #tpu.dot_dimension_numbers<[1], [0], [0], [1], [0, 0, 1, 1], [], []>} : vector<64x128xf32>, vector<128x128xf32>, vector<64x128xf32> -> vector<64x128xf32>
    %31 = arith.addf %25, %30 : vector<64x128xf32>
    %c0_34 = arith.constant 0 : index
    %c2 = arith.constant 2 : index
    %c0_35 = arith.constant 0 : index
    %32 = vector.load %arg11[%c0_34, %c2, %c0_35] : memref<10x10x128xf32, #tpu.memory_space<vmem>>, vector<8x8x128xf32>
    %33 = vector.shape_cast %32 : vector<8x8x128xf32> to vector<64x128xf32>
    %c2_36 = arith.constant 2 : index
    %c0_37 = arith.constant 0 : index
    %c0_38 = arith.constant 0 : index
    %34 = vector.load %arg4[%c2_36, %c0_37, %c0_38] : memref<9x128x128xf32, #tpu.memory_space<vmem>>, vector<1x128x128xf32>
    %35 = vector.shape_cast %34 : vector<1x128x128xf32> to vector<128x128xf32>
    %cst_39 = arith.constant dense<0.000000e+00> : vector<64x128xf32>
    %36 = tpu.matmul %33, %35, %cst_39 {dimension_numbers = #tpu.dot_dimension_numbers<[1], [0], [0], [1], [0, 0, 1, 1], [], []>} : vector<64x128xf32>, vector<128x128xf32>, vector<64x128xf32> -> vector<64x128xf32>
    %37 = arith.addf %31, %36 : vector<64x128xf32>
    %c1_40 = arith.constant 1 : index
    %c0_41 = arith.constant 0 : index
    %c0_42 = arith.constant 0 : index
    %38 = vector.load %arg11[%c1_40, %c0_41, %c0_42] : memref<10x10x128xf32, #tpu.memory_space<vmem>>, vector<8x8x128xf32>
    %39 = vector.shape_cast %38 : vector<8x8x128xf32> to vector<64x128xf32>
    %c3 = arith.constant 3 : index
    %c0_43 = arith.constant 0 : index
    %c0_44 = arith.constant 0 : index
    %40 = vector.load %arg4[%c3, %c0_43, %c0_44] : memref<9x128x128xf32, #tpu.memory_space<vmem>>, vector<1x128x128xf32>
    %41 = vector.shape_cast %40 : vector<1x128x128xf32> to vector<128x128xf32>
    %cst_45 = arith.constant dense<0.000000e+00> : vector<64x128xf32>
    %42 = tpu.matmul %39, %41, %cst_45 {dimension_numbers = #tpu.dot_dimension_numbers<[1], [0], [0], [1], [0, 0, 1, 1], [], []>} : vector<64x128xf32>, vector<128x128xf32>, vector<64x128xf32> -> vector<64x128xf32>
    %43 = arith.addf %37, %42 : vector<64x128xf32>
    %c1_46 = arith.constant 1 : index
    %c1_47 = arith.constant 1 : index
    %c0_48 = arith.constant 0 : index
    %44 = vector.load %arg11[%c1_46, %c1_47, %c0_48] : memref<10x10x128xf32, #tpu.memory_space<vmem>>, vector<8x8x128xf32>
    %45 = vector.shape_cast %44 : vector<8x8x128xf32> to vector<64x128xf32>
    %c4 = arith.constant 4 : index
    %c0_49 = arith.constant 0 : index
    %c0_50 = arith.constant 0 : index
    %46 = vector.load %arg4[%c4, %c0_49, %c0_50] : memref<9x128x128xf32, #tpu.memory_space<vmem>>, vector<1x128x128xf32>
    %47 = vector.shape_cast %46 : vector<1x128x128xf32> to vector<128x128xf32>
    %cst_51 = arith.constant dense<0.000000e+00> : vector<64x128xf32>
    %48 = tpu.matmul %45, %47, %cst_51 {dimension_numbers = #tpu.dot_dimension_numbers<[1], [0], [0], [1], [0, 0, 1, 1], [], []>} : vector<64x128xf32>, vector<128x128xf32>, vector<64x128xf32> -> vector<64x128xf32>
    %49 = arith.addf %43, %48 : vector<64x128xf32>
    %c1_52 = arith.constant 1 : index
    %c2_53 = arith.constant 2 : index
    %c0_54 = arith.constant 0 : index
    %50 = vector.load %arg11[%c1_52, %c2_53, %c0_54] : memref<10x10x128xf32, #tpu.memory_space<vmem>>, vector<8x8x128xf32>
    %51 = vector.shape_cast %50 : vector<8x8x128xf32> to vector<64x128xf32>
    %c5 = arith.constant 5 : index
    %c0_55 = arith.constant 0 : index
    %c0_56 = arith.constant 0 : index
    %52 = vector.load %arg4[%c5, %c0_55, %c0_56] : memref<9x128x128xf32, #tpu.memory_space<vmem>>, vector<1x128x128xf32>
    %53 = vector.shape_cast %52 : vector<1x128x128xf32> to vector<128x128xf32>
    %cst_57 = arith.constant dense<0.000000e+00> : vector<64x128xf32>
    %54 = tpu.matmul %51, %53, %cst_57 {dimension_numbers = #tpu.dot_dimension_numbers<[1], [0], [0], [1], [0, 0, 1, 1], [], []>} : vector<64x128xf32>, vector<128x128xf32>, vector<64x128xf32> -> vector<64x128xf32>
    %55 = arith.addf %49, %54 : vector<64x128xf32>
    %c2_58 = arith.constant 2 : index
    %c0_59 = arith.constant 0 : index
    %c0_60 = arith.constant 0 : index
    %56 = vector.load %arg11[%c2_58, %c0_59, %c0_60] : memref<10x10x128xf32, #tpu.memory_space<vmem>>, vector<8x8x128xf32>
    %57 = vector.shape_cast %56 : vector<8x8x128xf32> to vector<64x128xf32>
    %c6 = arith.constant 6 : index
    %c0_61 = arith.constant 0 : index
    %c0_62 = arith.constant 0 : index
    %58 = vector.load %arg4[%c6, %c0_61, %c0_62] : memref<9x128x128xf32, #tpu.memory_space<vmem>>, vector<1x128x128xf32>
    %59 = vector.shape_cast %58 : vector<1x128x128xf32> to vector<128x128xf32>
    %cst_63 = arith.constant dense<0.000000e+00> : vector<64x128xf32>
    %60 = tpu.matmul %57, %59, %cst_63 {dimension_numbers = #tpu.dot_dimension_numbers<[1], [0], [0], [1], [0, 0, 1, 1], [], []>} : vector<64x128xf32>, vector<128x128xf32>, vector<64x128xf32> -> vector<64x128xf32>
    %61 = arith.addf %55, %60 : vector<64x128xf32>
    %c2_64 = arith.constant 2 : index
    %c1_65 = arith.constant 1 : index
    %c0_66 = arith.constant 0 : index
    %62 = vector.load %arg11[%c2_64, %c1_65, %c0_66] : memref<10x10x128xf32, #tpu.memory_space<vmem>>, vector<8x8x128xf32>
    %63 = vector.shape_cast %62 : vector<8x8x128xf32> to vector<64x128xf32>
    %c7 = arith.constant 7 : index
    %c0_67 = arith.constant 0 : index
    %c0_68 = arith.constant 0 : index
    %64 = vector.load %arg4[%c7, %c0_67, %c0_68] : memref<9x128x128xf32, #tpu.memory_space<vmem>>, vector<1x128x128xf32>
    %65 = vector.shape_cast %64 : vector<1x128x128xf32> to vector<128x128xf32>
    %cst_69 = arith.constant dense<0.000000e+00> : vector<64x128xf32>
    %66 = tpu.matmul %63, %65, %cst_69 {dimension_numbers = #tpu.dot_dimension_numbers<[1], [0], [0], [1], [0, 0, 1, 1], [], []>} : vector<64x128xf32>, vector<128x128xf32>, vector<64x128xf32> -> vector<64x128xf32>
    %67 = arith.addf %61, %66 : vector<64x128xf32>
    %c2_70 = arith.constant 2 : index
    %c2_71 = arith.constant 2 : index
    %c0_72 = arith.constant 0 : index
    %68 = vector.load %arg11[%c2_70, %c2_71, %c0_72] : memref<10x10x128xf32, #tpu.memory_space<vmem>>, vector<8x8x128xf32>
    %69 = vector.shape_cast %68 : vector<8x8x128xf32> to vector<64x128xf32>
    %c8 = arith.constant 8 : index
    %c0_73 = arith.constant 0 : index
    %c0_74 = arith.constant 0 : index
    %70 = vector.load %arg4[%c8, %c0_73, %c0_74] : memref<9x128x128xf32, #tpu.memory_space<vmem>>, vector<1x128x128xf32>
    %71 = vector.shape_cast %70 : vector<1x128x128xf32> to vector<128x128xf32>
    %cst_75 = arith.constant dense<0.000000e+00> : vector<64x128xf32>
    %72 = tpu.matmul %69, %71, %cst_75 {dimension_numbers = #tpu.dot_dimension_numbers<[1], [0], [0], [1], [0, 0, 1, 1], [], []>} : vector<64x128xf32>, vector<128x128xf32>, vector<64x128xf32> -> vector<64x128xf32>
    %73 = arith.addf %67, %72 : vector<64x128xf32>
    %c0_76 = arith.constant 0 : index
    %c0_77 = arith.constant 0 : index
    %74 = vector.load %arg5[%c0_76, %c0_77] : memref<1x128xf32, #tpu.memory_space<vmem>>, vector<1x128xf32>
    %75 = vector.broadcast %74 : vector<1x128xf32> to vector<64x128xf32>
    %76 = arith.addf %73, %75 : vector<64x128xf32>
    %cst_78 = arith.constant 0.000000e+00 : f32
    %77 = vector.broadcast %cst_78 : f32 to vector<64x128xf32>
    %78 = arith.maximumf %76, %77 : vector<64x128xf32>
    %c0_79 = arith.constant 0 : index
    %c0_80 = arith.constant 0 : index
    %79 = vector.load %arg6[%c0_79, %c0_80] : memref<128x128xf32, #tpu.memory_space<vmem>>, vector<128x128xf32>
    %cst_81 = arith.constant dense<0.000000e+00> : vector<64x128xf32>
    %80 = tpu.matmul %78, %79, %cst_81 {dimension_numbers = #tpu.dot_dimension_numbers<[1], [0], [0], [1], [0, 0, 1, 1], [], []>} : vector<64x128xf32>, vector<128x128xf32>, vector<64x128xf32> -> vector<64x128xf32>
    %c0_82 = arith.constant 0 : index
    %c0_83 = arith.constant 0 : index
    %81 = vector.load %arg7[%c0_82, %c0_83] : memref<1x128xf32, #tpu.memory_space<vmem>>, vector<1x128xf32>
    %82 = vector.broadcast %81 : vector<1x128xf32> to vector<64x128xf32>
    %83 = arith.addf %80, %82 : vector<64x128xf32>
    %84 = arith.addf %83, %18 : vector<64x128xf32>
    %cst_84 = arith.constant 0.000000e+00 : f32
    %85 = vector.broadcast %cst_84 : f32 to vector<64x128xf32>
    %86 = arith.maximumf %84, %85 : vector<64x128xf32>
    %87 = vector.shape_cast %86 : vector<64x128xf32> to vector<1x8x8x128xf32>
    %c0_85 = arith.constant 0 : index
    %c0_86 = arith.constant 0 : index
    %c0_87 = arith.constant 0 : index
    %c0_88 = arith.constant 0 : index
    %88 = vector.load %arg10[%c0_85, %c0_86, %c0_87, %c0_88] : memref<1x8x8x128xf32, #tpu.memory_space<vmem>>, vector<1x8x8x128xf32>
    tpu.vector_store %arg10[%c0_85, %c0_86, %c0_87, %c0_88], %87 {strides = array<i32>} : memref<1x8x8x128xf32, #tpu.memory_space<vmem>>, vector<1x8x8x128xf32>,
    return
  }
  func.func @transform_0(%arg0: i32) -> (i32, i32, i32, i32) {
    %c0_i32 = arith.constant 0 : i32
    %c0_i32_0 = arith.constant 0 : i32
    %c0_i32_1 = arith.constant 0 : i32
    %c0_i32_2 = arith.constant 0 : i32
    return %arg0, %c0_i32, %c0_i32_0, %c0_i32_1 : i32, i32, i32, i32
  }
  func.func @transform_1(%arg0: i32) -> (i32, i32) {
    %c0_i32 = arith.constant 0 : i32
    %c0_i32_0 = arith.constant 0 : i32
    %c0_i32_1 = arith.constant 0 : i32
    return %c0_i32, %c0_i32_0 : i32, i32
  }
  func.func @transform_2(%arg0: i32) -> (i32, i32) {
    %c0_i32 = arith.constant 0 : i32
    %c0_i32_0 = arith.constant 0 : i32
    %c0_i32_1 = arith.constant 0 : i32
    return %c0_i32, %c0_i32_0 : i32, i32
  }
  func.func @transform_3(%arg0: i32) -> (i32, i32, i32) {
    %c0_i32 = arith.constant 0 : i32
    %c0_i32_0 = arith.constant 0 : i32
    %c0_i32_1 = arith.constant 0 : i32
    %c0_i32_2 = arith.constant 0 : i32
    return %c0_i32, %c0_i32_0, %c0_i32_1 : i32, i32, i32
  }
  func.func @transform_4(%arg0: i32) -> (i32, i32) {
    %c0_i32 = arith.constant 0 : i32
    %c0_i32_0 = arith.constant 0 : i32
    %c0_i32_1 = arith.constant 0 : i32
    return %c0_i32, %c0_i32_0 : i32, i32
  }
  func.func @transform_5(%arg0: i32) -> (i32, i32) {
    %c0_i32 = arith.constant 0 : i32
    %c0_i32_0 = arith.constant 0 : i32
    %c0_i32_1 = arith.constant 0 : i32
    return %c0_i32, %c0_i32_0 : i32, i32
  }
  func.func @transform_6(%arg0: i32) -> (i32, i32) {
    %c0_i32 = arith.constant 0 : i32
    %c0_i32_0 = arith.constant 0 : i32
    %c0_i32_1 = arith.constant 0 : i32
    return %c0_i32, %c0_i32_0 : i32, i32
  }
  func.func @transform_7(%arg0: i32) -> (i32, i32) {
    %c0_i32 = arith.constant 0 : i32
    %c0_i32_0 = arith.constant 0 : i32
    %c0_i32_1 = arith.constant 0 : i32
    return %c0_i32, %c0_i32_0 : i32, i32
  }
  func.func @transform_8(%arg0: i32) -> (i32, i32) {
    %c0_i32 = arith.constant 0 : i32
    %c0_i32_0 = arith.constant 0 : i32
    %c0_i32_1 = arith.constant 0 : i32
    return %c0_i32, %c0_i32_0 : i32, i32
  }
  func.func @transform_9(%arg0: i32) -> (i32, i32, i32, i32) {
    %c0_i32 = arith.constant 0 : i32
    %c0_i32_0 = arith.constant 0 : i32
    %c0_i32_1 = arith.constant 0 : i32
    %c0_i32_2 = arith.constant 0 : i32
    return %arg0, %c0_i32, %c0_i32_0, %c0_i32_1 : i32, i32, i32, i32
  }
}

</mosaic_0001>

<llo_original>
// kernel: bottleneck_forward.1
$region0: #{bottleneck_forward.1}
  #allocation0 [shape = 'u32[]', space=smem, size = 0x4, offset = 0x4, fixed_abs, tag = 'smem constant byte address 0x4 - core index']
  #allocation1 [shape = 'u32[144,128]{1,0:T(1,128)}', space=vmem, size = 0x12000, scoped, tag = 'internal scratch']
  #allocation2 [shape = 'f32[10,10,128]{2,1,0:T(8,128)}', space=vmem, size = 0x14000, scoped, tag = 'scratch operand']
  %s0 = inlined_call_operand.vmem [shape: f32[2,8,8,128], index: 0, kind: input, shape index: {}]
  %s1 = inlined_call_operand.vmem [shape: f32[128,128], index: 1, kind: input, shape index: {}]
  %s2 = inlined_call_operand.vmem [shape: f32[1,128], index: 2, kind: input, shape index: {}]
  %s3 = inlined_call_operand.vmem [shape: f32[9,128,128], index: 3, kind: input, shape index: {}]
  %s4 = inlined_call_operand.vmem [shape: f32[1,128], index: 4, kind: input, shape index: {}]
  %s5 = inlined_call_operand.vmem [shape: f32[128,128], index: 5, kind: input, shape index: {}]
  %s6 = inlined_call_operand.vmem [shape: f32[1,128], index: 6, kind: input, shape index: {}]
  %s7 = inlined_call_operand.vmem [shape: f32[128,128], index: 7, kind: input, shape index: {}]
  %s8 = inlined_call_operand.vmem [shape: f32[1,128], index: 8, kind: input, shape index: {}]
  %s9 = inlined_call_operand.vmem [shape: f32[2,8,8,128], index: 9, kind: output, shape index: {}]
  %s10 = sld [smem:[#allocation0]]
  $region69: #{bottleneck_forward.1} parent=0
    _
  %s12 = ssub.s32 1, %s10
  %s13 = scalar_select 0, %s12, %s10
  loop: start=0, step=1, limit=4
  $region2: #{bottleneck_forward.1} parent=0 // loop_pre_header
    _
  $region3: #{bottleneck_forward.1} parent=0 // loop_header
    %s15 = sphi 0, %s19
    %p16 = scmp.ge.s32.totalorder %s15, 4
    %s25 = sphi 0, %s27
    %s28 = sphi 0, %s25
    %s29 = sphi 0, %s28
    %s45 = sphi 0, %s29
    %s49 = sphi 0, %s49
    %s51 = sphi 0, %s49
    %s52 = sphi 0, %s51
    %s66 = sphi 0, %s52
    %s70 = sphi 0, %s70
    %s72 = sphi 0, %s70
    %s73 = sphi 0, %s72
    %s87 = sphi 0, %s73
    %s91 = sphi 0, %s91
    %s93 = sphi 0, %s91
    %s94 = sphi 0, %s93
    %s108 = sphi 0, %s94
    %s112 = sphi 0, %s112
    %s114 = sphi 0, %s112
    %s115 = sphi 0, %s114
    %s129 = sphi 0, %s115
    %s133 = sphi 0, %s133
    %s135 = sphi 0, %s133
    %s136 = sphi 0, %s135
    %s150 = sphi 0, %s136
    %s154 = sphi 0, %s154
    %s156 = sphi 0, %s154
    %s157 = sphi 0, %s156
    %s171 = sphi 0, %s157
    %s175 = sphi 0, %s175
    %s177 = sphi 0, %s175
    %s178 = sphi 0, %s177
    %s192 = sphi 0, %s178
    %s196 = sphi 0, %s196
    %s198 = sphi 0, %s196
    %s199 = sphi 0, %s198
    %s213 = sphi 0, %s199
    %s219 = sphi 0, %s221
    %s222 = sphi 0, %s219
    %s223 = sphi 0, %s222
    %s239 = sphi 0, %s223
  $region4: #{bottleneck_forward.1} parent=0 // loop_header_branch
    %18 = sbr.rel (%p16) target = $region8
  $region5: #{bottleneck_forward.1} parent=0 // loop_body
    %s20 = ssub.s32 %s15, 1
    %s21 = ssub.s32 %s15, 2
    %s22 = sadd.s32 %s15, 1
    %s23 = ssub.s32 %s15, %s22
    %p24 = scmp.eq.s32.totalorder %s23, 0
    %s26 = sadd.s32 %s25, 1
    %s27 = scalar_select %p24, %s25, %s26
    %p30 = pneg %p24
    %p31 = scmp.eq.s32.totalorder %s15, 1
    %p32 = por %p30, %p31
    %p33 = scmp.ne.s32.totalorder %s25, %s28
    %p34 = scmp.eq.s32.totalorder %s15, 0
    %p35 = por %p33, %p34
    %p36 = scmp.ne.s32.totalorder %s25, %s28
    %p37 = scmp.eq.s32.totalorder %s20, 1
    %p38 = por %p36, %p37
    %p39 = scmp.ne.s32.totalorder %s28, %s29
    %p40 = scmp.eq.s32.totalorder %s20, 0
    %p41 = por %p39, %p40
    %p42 = scmp.ne.s32.totalorder %s28, %s29
    %p43 = scmp.eq.s32.totalorder %s21, 1
    %p44 = por %p42, %p43
    %p46 = scmp.ne.s32.totalorder %s29, %s45
    %p47 = scmp.eq.s32.totalorder %s21, 0
    %p48 = por %p46, %p47
    %s50 = sadd.s32 %s49, 1
    %p53 = scmp.eq.s32.totalorder %s15, 1
    %p54 = scmp.ne.s32.totalorder %s49, %s51
    %p55 = scmp.eq.s32.totalorder %s15, 0
    %p56 = por %p54, %p55
    %p57 = scmp.ne.s32.totalorder %s49, %s51
    %p58 = scmp.eq.s32.totalorder %s20, 1
    %p59 = por %p57, %p58
    %p60 = scmp.ne.s32.totalorder %s51, %s52
    %p61 = scmp.eq.s32.totalorder %s20, 0
    %p62 = por %p60, %p61
    %p63 = scmp.ne.s32.totalorder %s51, %s52
    %p64 = scmp.eq.s32.totalorder %s21, 1
    %p65 = por %p63, %p64
    %p67 = scmp.ne.s32.totalorder %s52, %s66
    %p68 = scmp.eq.s32.totalorder %s21, 0
    %p69 = por %p67, %p68
    %s71 = sadd.s32 %s70, 1
    %p74 = scmp.eq.s32.totalorder %s15, 1
    %p75 = scmp.ne.s32.totalorder %s70, %s72
    %p76 = scmp.eq.s32.totalorder %s15, 0
    %p77 = por %p75, %p76
    %p78 = scmp.ne.s32.totalorder %s70, %s72
    %p79 = scmp.eq.s32.totalorder %s20, 1
    %p80 = por %p78, %p79
    %p81 = scmp.ne.s32.totalorder %s72, %s73
    %p82 = scmp.eq.s32.totalorder %s20, 0
    %p83 = por %p81, %p82
    %p84 = scmp.ne.s32.totalorder %s72, %s73
    %p85 = scmp.eq.s32.totalorder %s21, 1
    %p86 = por %p84, %p85
    %p88 = scmp.ne.s32.totalorder %s73, %s87
    %p89 = scmp.eq.s32.totalorder %s21, 0
    %p90 = por %p88, %p89
    %s92 = sadd.s32 %s91, 1
    %p95 = scmp.eq.s32.totalorder %s15, 1
    %p96 = scmp.ne.s32.totalorder %s91, %s93
    %p97 = scmp.eq.s32.totalorder %s15, 0
    %p98 = por %p96, %p97
    %p99 = scmp.ne.s32.totalorder %s91, %s93
    %p100 = scmp.eq.s32.totalorder %s20, 1
    %p101 = por %p99, %p100
    %p102 = scmp.ne.s32.totalorder %s93, %s94
    %p103 = scmp.eq.s32.totalorder %s20, 0
    %p104 = por %p102, %p103
    %p105 = scmp.ne.s32.totalorder %s93, %s94
    %p106 = scmp.eq.s32.totalorder %s21, 1
    %p107 = por %p105, %p106
    %p109 = scmp.ne.s32.totalorder %s94, %s108
    %p110 = scmp.eq.s32.totalorder %s21, 0
    %p111 = por %p109, %p110
    %s113 = sadd.s32 %s112, 1
    %p116 = scmp.eq.s32.totalorder %s15, 1
    %p117 = scmp.ne.s32.totalorder %s112, %s114
    %p118 = scmp.eq.s32.totalorder %s15, 0
    %p119 = por %p117, %p118
    %p120 = scmp.ne.s32.totalorder %s112, %s114
    %p121 = scmp.eq.s32.totalorder %s20, 1
    %p122 = por %p120, %p121
    %p123 = scmp.ne.s32.totalorder %s114, %s115
    %p124 = scmp.eq.s32.totalorder %s20, 0
    %p125 = por %p123, %p124
    %p126 = scmp.ne.s32.totalorder %s114, %s115
    %p127 = scmp.eq.s32.totalorder %s21, 1
    %p128 = por %p126, %p127
    %p130 = scmp.ne.s32.totalorder %s115, %s129
    %p131 = scmp.eq.s32.totalorder %s21, 0
    %p132 = por %p130, %p131
    %s134 = sadd.s32 %s133, 1
    %p137 = scmp.eq.s32.totalorder %s15, 1
    %p138 = scmp.ne.s32.totalorder %s133, %s135
    %p139 = scmp.eq.s32.totalorder %s15, 0
    %p140 = por %p138, %p139
    %p141 = scmp.ne.s32.totalorder %s133, %s135
    %p142 = scmp.eq.s32.totalorder %s20, 1
    %p143 = por %p141, %p142
    %p144 = scmp.ne.s32.totalorder %s135, %s136
    %p145 = scmp.eq.s32.totalorder %s20, 0
    %p146 = por %p144, %p145
    %p147 = scmp.ne.s32.totalorder %s135, %s136
    %p148 = scmp.eq.s32.totalorder %s21, 1
    %p149 = por %p147, %p148
    %p151 = scmp.ne.s32.totalorder %s136, %s150
    %p152 = scmp.eq.s32.totalorder %s21, 0
    %p153 = por %p151, %p152
    %s155 = sadd.s32 %s154, 1
    %p158 = scmp.eq.s32.totalorder %s15, 1
    %p159 = scmp.ne.s32.totalorder %s154, %s156
    %p160 = scmp.eq.s32.totalorder %s15, 0
    %p161 = por %p159, %p160
    %p162 = scmp.ne.s32.totalorder %s154, %s156
    %p163 = scmp.eq.s32.totalorder %s20, 1
    %p164 = por %p162, %p163
    %p165 = scmp.ne.s32.totalorder %s156, %s157
    %p166 = scmp.eq.s32.totalorder %s20, 0
    %p167 = por %p165, %p166
    %p168 = scmp.ne.s32.totalorder %s156, %s157
    %p169 = scmp.eq.s32.totalorder %s21, 1
    %p170 = por %p168, %p169
    %p172 = scmp.ne.s32.totalorder %s157, %s171
    %p173 = scmp.eq.s32.totalorder %s21, 0
    %p174 = por %p172, %p173
    %s176 = sadd.s32 %s175, 1
    %p179 = scmp.eq.s32.totalorder %s15, 1
    %p180 = scmp.ne.s32.totalorder %s175, %s177
    %p181 = scmp.eq.s32.totalorder %s15, 0
    %p182 = por %p180, %p181
    %p183 = scmp.ne.s32.totalorder %s175, %s177
    %p184 = scmp.eq.s32.totalorder %s20, 1
    %p185 = por %p183, %p184
    %p186 = scmp.ne.s32.totalorder %s177, %s178
    %p187 = scmp.eq.s32.totalorder %s20, 0
    %p188 = por %p186, %p187
    %p189 = scmp.ne.s32.totalorder %s177, %s178
    %p190 = scmp.eq.s32.totalorder %s21, 1
    %p191 = por %p189, %p190
    %p193 = scmp.ne.s32.totalorder %s178, %s192
    %p194 = scmp.eq.s32.totalorder %s21, 0
    %p195 = por %p193, %p194
    %s197 = sadd.s32 %s196, 1
    %p200 = scmp.eq.s32.totalorder %s15, 1
    %p201 = scmp.ne.s32.totalorder %s196, %s198
    %p202 = scmp.eq.s32.totalorder %s15, 0
    %p203 = por %p201, %p202
    %p204 = scmp.ne.s32.totalorder %s196, %s198
    %p205 = scmp.eq.s32.totalorder %s20, 1
    %p206 = por %p204, %p205
    %p207 = scmp.ne.s32.totalorder %s198, %s199
    %p208 = scmp.eq.s32.totalorder %s20, 0
    %p209 = por %p207, %p208
    %p210 = scmp.ne.s32.totalorder %s198, %s199
    %p211 = scmp.eq.s32.totalorder %s21, 1
    %p212 = por %p210, %p211
    %p214 = scmp.ne.s32.totalorder %s199, %s213
    %p215 = scmp.eq.s32.totalorder %s21, 0
    %p216 = por %p214, %p215
    %s217 = ssub.s32 %s15, %s22
    %p218 = scmp.eq.s32.totalorder %s217, 0
    %s220 = sadd.s32 %s219, 1
    %s221 = scalar_select %p218, %s219, %s220
    %p224 = pneg %p218
    %p225 = scmp.eq.s32.totalorder %s15, 1
    %p226 = por %p224, %p225
    %p227 = scmp.ne.s32.totalorder %s219, %s222
    %p228 = scmp.eq.s32.totalorder %s15, 0
    %p229 = por %p227, %p228
    %p230 = scmp.ne.s32.totalorder %s219, %s222
    %p231 = scmp.eq.s32.totalorder %s20, 1
    %p232 = por %p230, %p231
    %p233 = scmp.ne.s32.totalorder %s222, %s223
    %p234 = scmp.eq.s32.totalorder %s20, 0
    %p235 = por %p233, %p234
    %p236 = scmp.ne.s32.totalorder %s222, %s223
    %p237 = scmp.eq.s32.totalorder %s21, 1
    %p238 = por %p236, %p237
    %p240 = scmp.ne.s32.totalorder %s223, %s239
    %p241 = scmp.eq.s32.totalorder %s21, 0
    %p242 = por %p240, %p241
    %p243 = scmp.le.s32.totalorder 1, %s15
    %p244 = scmp.lt.s32.totalorder %s15, 3
    %p245 = pnand %p243, %p244
    %p246 = pneg %p245
    // Predicated region
    $region9: #{bottleneck_forward.1} parent=5 // pred_check
      _
    $region10: #{bottleneck_forward.1} parent=5 // pred_check_branch
      %248 = sbr.rel (%p245) target = $region12
    $region11: #{bottleneck_forward.1} parent=5 // pred_region
      %s249 = ssub.s32 %s15, 1
      // Predicated region
      $region13: #{bottleneck_forward.1} parent=11 // pred_check
        %p250 = pneg %p62
      $region14: #{bottleneck_forward.1} parent=11 // pred_check_branch
        %252 = sbr.rel (%p250) target = $region16
      $region15: #{bottleneck_forward.1} parent=11 // pred_region
        _
      $region16: #{bottleneck_forward.1} parent=11 // pred_fallthru
        _
      // Predicated region
      $region17: #{bottleneck_forward.1} parent=11 // pred_check
        %p253 = pneg %p83
      $region18: #{bottleneck_forward.1} parent=11 // pred_check_branch
        %255 = sbr.rel (%p253) target = $region20
      $region19: #{bottleneck_forward.1} parent=11 // pred_region
        _
      $region20: #{bottleneck_forward.1} parent=11 // pred_fallthru
        _
      // Predicated region
      $region21: #{bottleneck_forward.1} parent=11 // pred_check
        %p256 = pneg %p104
      $region22: #{bottleneck_forward.1} parent=11 // pred_check_branch
        %258 = sbr.rel (%p256) target = $region24
      $region23: #{bottleneck_forward.1} parent=11 // pred_region
        _
      $region24: #{bottleneck_forward.1} parent=11 // pred_fallthru
        _
      // Predicated region
      $region25: #{bottleneck_forward.1} parent=11 // pred_check
        %p259 = pneg %p125
      $region26: #{bottleneck_forward.1} parent=11 // pred_check_branch
        %261 = sbr.rel (%p259) target = $region28
      $region27: #{bottleneck_forward.1} parent=11 // pred_region
        _
      $region28: #{bottleneck_forward.1} parent=11 // pred_fallthru
        _
      // Predicated region
      $region29: #{bottleneck_forward.1} parent=11 // pred_check
        %p262 = pneg %p146
      $region30: #{bottleneck_forward.1} parent=11 // pred_check_branch
        %264 = sbr.rel (%p262) target = $region32
      $region31: #{bottleneck_forward.1} parent=11 // pred_region
        _
      $region32: #{bottleneck_forward.1} parent=11 // pred_fallthru
        _
      // Predicated region
      $region33: #{bottleneck_forward.1} parent=11 // pred_check
        %p265 = pneg %p167
      $region34: #{bottleneck_forward.1} parent=11 // pred_check_branch
        %267 = sbr.rel (%p265) target = $region36
      $region35: #{bottleneck_forward.1} parent=11 // pred_region
        _
      $region36: #{bottleneck_forward.1} parent=11 // pred_fallthru
        _
      // Predicated region
      $region37: #{bottleneck_forward.1} parent=11 // pred_check
        %p268 = pneg %p188
      $region38: #{bottleneck_forward.1} parent=11 // pred_check_branch
        %270 = sbr.rel (%p268) target = $region40
      $region39: #{bottleneck_forward.1} parent=11 // pred_region
        _
      $region40: #{bottleneck_forward.1} parent=11 // pred_fallthru
        _
      // Predicated region
      $region41: #{bottleneck_forward.1} parent=11 // pred_check
        %p271 = pneg %p209
      $region42: #{bottleneck_forward.1} parent=11 // pred_check_branch
        %273 = sbr.rel (%p271) target = $region44
      $region43: #{bottleneck_forward.1} parent=11 // pred_region
        _
      $region44: #{bottleneck_forward.1} parent=11 // pred_fallthru
        _
    $region12: #{bottleneck_forward.1} parent=5 // pred_fallthru
      _
    %p274 = scmp.lt.s32.totalorder %s15, 2
    // Predicated region
    $region45: #{bottleneck_forward.1} parent=5 // pred_check
      %p275 = pneg %p274
    $region46: #{bottleneck_forward.1} parent=5 // pred_check_branch
      %277 = sbr.rel (%p275) target = $region48
    $region47: #{bottleneck_forward.1} parent=5 // pred_region
      // Predicated region
      $region49: #{bottleneck_forward.1} parent=47 // pred_check
        %p278 = pneg %p35
      $region50: #{bottleneck_forward.1} parent=47 // pred_check_branch
        %280 = sbr.rel (%p278) target = $region52
      $region51: #{bottleneck_forward.1} parent=47 // pred_region
        %p281 = scmp.lt.s32.totalorder %s15, 1
        %s282 = scalar_select %p281, %s15, 1
        %s283 = smul.addr %s282, 8
        %s284 = smul.addr %s283, 8
        %s285 = scalar_lea.vmem %s0, %s284
      $region52: #{bottleneck_forward.1} parent=47 // pred_fallthru
        _
    $region48: #{bottleneck_forward.1} parent=5 // pred_fallthru
      _
    %p286 = scmp.le.s32.totalorder 1, %s15
    %p287 = scmp.lt.s32.totalorder %s15, 3
    %p288 = pnand %p286, %p287
    %p289 = pneg %p288
    // Predicated region
    $region53: #{bottleneck_forward.1} parent=5 // pred_check
      _
    $region54: #{bottleneck_forward.1} parent=5 // pred_check_branch
      %291 = sbr.rel (%p288) target = $region56
    $region55: #{bottleneck_forward.1} parent=5 // pred_region
      %s292 = ssub.s32 %s15, 1
      %p293 = scmp.lt.s32.totalorder %s20, 1
      %s294 = scalar_select %p293, %s20, 1
      %s295 = smul.addr %s294, 8
      %s296 = smul.addr %s295, 8
      %s297 = scalar_lea.vmem %s0, %s296
      %p298 = pneg %p41
      %p299 = pneg %p38
      %p300 = pneg %p62
      %p301 = pneg %p59
      %p302 = pneg %p83
      %p303 = pneg %p80
      %p304 = pneg %p104
      %p305 = pneg %p101
      %p306 = pneg %p125
      %p307 = pneg %p122
      %p308 = pneg %p146
      %p309 = pneg %p143
      %p310 = pneg %p167
      %p311 = pneg %p164
      %p312 = pneg %p188
      %p313 = pneg %p185
      %p314 = pneg %p209
      %p315 = pneg %p206
      %p316 = pneg %p235
      %p317 = pneg %p232
      %p318 = scmp.lt.s32.totalorder %s20, 1
      %s319 = scalar_select %p318, %s20, 1
      %s320 = smul.addr %s319, 8
      %s321 = smul.addr %s320, 8
      %s322 = scalar_lea.vmem %s9, %s321
      %p323 = scmp.lt.s32.totalorder %s20, 1
      %s324 = scalar_select %p323, %s20, 1
      %s325 = smul.addr %s324, 8
      %s326 = smul.addr %s325, 8
      %s327 = scalar_lea.vmem %s0, %s326
      %p328 = scmp.lt.s32.totalorder %s20, 1
      %s329 = scalar_select %p328, %s20, 1
      %s330 = smul.addr %s329, 8
      %s331 = smul.addr %s330, 8
      %s332 = scalar_lea.vmem %s9, %s331
      %v333 = vld [vmem:[%s327] sm:$0xff]
      %v334 = vld [vmem:[%s327 + $0x8] sm:$0xff]
      %v335 = vld [vmem:[%s327 + $0x10] sm:$0xff]
      %v336 = vld [vmem:[%s327 + $0x18] sm:$0xff]
      %v337 = vld [vmem:[%s327 + $0x20] sm:$0xff]
      %v338 = vld [vmem:[%s327 + $0x28] sm:$0xff]
      %v339 = vld [vmem:[%s327 + $0x30] sm:$0xff]
      %v340 = vld [vmem:[%s327 + $0x38] sm:$0xff]
      %v341 = vld [vmem:[%s1] sm:$0xff]
      %v342 = vld [vmem:[%s1 + $0x8] sm:$0xff]
      %v343 = vld [vmem:[%s1 + $0x10] sm:$0xff]
      %v344 = vld [vmem:[%s1 + $0x18] sm:$0xff]
      %v345 = vld [vmem:[%s1 + $0x20] sm:$0xff]
      %v346 = vld [vmem:[%s1 + $0x28] sm:$0xff]
      %v347 = vld [vmem:[%s1 + $0x30] sm:$0xff]
      %v348 = vld [vmem:[%s1 + $0x38] sm:$0xff]
      %v349 = vld [vmem:[%s1 + $0x40] sm:$0xff]
      %v350 = vld [vmem:[%s1 + $0x48] sm:$0xff]
      %v351 = vld [vmem:[%s1 + $0x50] sm:$0xff]
      %v352 = vld [vmem:[%s1 + $0x58] sm:$0xff]
      %v353 = vld [vmem:[%s1 + $0x60] sm:$0xff]
      %v354 = vld [vmem:[%s1 + $0x68] sm:$0xff]
      %v355 = vld [vmem:[%s1 + $0x70] sm:$0xff]
      %v356 = vld [vmem:[%s1 + $0x78] sm:$0xff]
      %v357 = vld [vmem:[%s2] sm:$0x1]
      %v359 = vlaneseq
      %v360 = vshrl.u32 %v359, 7
      %v361 = vsub.s32 0, %v360
      %v362 = vrot.slane %v357, %v361
      %364 = vmatprep.subr.mxu0 0.0
      %365 = vmatpush1.msra.mxu0 %v356
      %366 = vmatprep.subr.mxu0 0.0
      %367 = vmatpush1.msra.mxu0 %v355
      %368 = vmatprep.subr.mxu0 0.0
      %369 = vmatpush1.msra.mxu0 %v354
      %370 = vmatprep.subr.mxu0 0.0
      %371 = vmatpush1.msra.mxu0 %v353
      %372 = vmatprep.subr.mxu0 0.0
      %373 = vmatpush1.msra.mxu0 %v352
      %374 = vmatprep.subr.mxu0 0.0
      %375 = vmatpush1.msra.mxu0 %v351
      %376 = vmatprep.subr.mxu0 0.0
      %377 = vmatpush1.msra.mxu0 %v350
      %378 = vmatprep.subr.mxu0 0.0
      %379 = vmatpush1.msra.mxu0 %v349
      %380 = vmatprep.subr.mxu0 0.0
      %381 = vmatpush1.msra.mxu0 %v348
      %382 = vmatprep.subr.mxu0 0.0
      %383 = vmatpush1.msra.mxu0 %v347
      %384 = vmatprep.subr.mxu0 0.0
      %385 = vmatpush1.msra.mxu0 %v346
      %386 = vmatprep.subr.mxu0 0.0
      %387 = vmatpush1.msra.mxu0 %v345
      %388 = vmatprep.subr.mxu0 0.0
      %389 = vmatpush1.msra.mxu0 %v344
      %390 = vmatprep.subr.mxu0 0.0
      %391 = vmatpush1.msra.mxu0 %v343
      %392 = vmatprep.subr.mxu0 0.0
      %393 = vmatpush1.msra.mxu0 %v342
      %394 = vmatprep.subr.mxu0 0.0
      %395 = vmatpush1.msra.mxu0 %v341
      %396 = vmatprep.subr.mxu0 0.0
      %397 = vmatpush2.msra.mxu0 0.0
      %398 = vmatprep.subr.mxu0 0.0
      %399 = vmatpush2.msra.mxu0 0.0
      %400 = vmatprep.subr.mxu0 0.0
      %401 = vmatpush2.msra.mxu0 0.0
      %402 = vmatprep.subr.mxu0 0.0
      %403 = vmatpush2.msra.mxu0 0.0
      %404 = vmatprep.subr.mxu0 0.0
      %405 = vmatpush2.msra.mxu0 0.0
      %406 = vmatprep.subr.mxu0 0.0
      %407 = vmatpush2.msra.mxu0 0.0
      %408 = vmatprep.subr.mxu0 0.0
      %409 = vmatpush2.msra.mxu0 0.0
      %410 = vmatprep.subr.mxu0 0.0
      %411 = vmatpush2.msra.mxu0 0.0
      %412 = vmatprep.subr.mxu0 0.0
      %413 = vmatpush2.msra.mxu0 0.0
      %414 = vmatprep.subr.mxu0 0.0
      %415 = vmatpush2.msra.mxu0 0.0
      %416 = vmatprep.subr.mxu0 0.0
      %417 = vmatpush2.msra.mxu0 0.0
      %418 = vmatprep.subr.mxu0 0.0
      %419 = vmatpush2.msra.mxu0 0.0
      %420 = vmatprep.subr.mxu0 0.0
      %421 = vmatpush2.msra.mxu0 0.0
      %422 = vmatprep.subr.mxu0 0.0
      %423 = vmatpush2.msra.mxu0 0.0
      %424 = vmatprep.subr.mxu0 0.0
      %425 = vmatpush2.msra.mxu0 0.0
      %426 = vmatprep.subr.mxu0 0.0
      %427 = vmatpush2.msra.mxu0 0.0
      %428 = vmatprep.mubr.f32.mxu0 0.0
      %429 = vmatmul.mubr.f32.gmra.mxu0 %v333
      %v430 = vpop.f32.mrf.mxu0
      %v431 = vadd.f32 %v362, %v430
      %v432 = vpop.f32.mrf.mxu0
      %433 = vmatprep.mubr.f32.mxu0 0.0
      %434 = vmatmul.mubr.f32.gmra.mxu0 %v334
      %v435 = vpop.f32.mrf.mxu0
      %v436 = vadd.f32 %v362, %v435
      %v437 = vpop.f32.mrf.mxu0
      %438 = vmatprep.mubr.f32.mxu0 0.0
      %439 = vmatmul.mubr.f32.gmra.mxu0 %v335
      %v440 = vpop.f32.mrf.mxu0
      %v441 = vadd.f32 %v362, %v440
      %v442 = vpop.f32.mrf.mxu0
      %443 = vmatprep.mubr.f32.mxu0 0.0
      %444 = vmatmul.mubr.f32.gmra.mxu0 %v336
      %v445 = vpop.f32.mrf.mxu0
      %v446 = vadd.f32 %v362, %v445
      %v447 = vpop.f32.mrf.mxu0
      %448 = vmatprep.mubr.f32.mxu0 0.0
      %449 = vmatmul.mubr.f32.gmra.mxu0 %v337
      %v450 = vpop.f32.mrf.mxu0
      %v451 = vadd.f32 %v362, %v450
      %v452 = vpop.f32.mrf.mxu0
      %453 = vmatprep.mubr.f32.mxu0 0.0
      %454 = vmatmul.mubr.f32.gmra.mxu0 %v338
      %v455 = vpop.f32.mrf.mxu0
      %v456 = vadd.f32 %v362, %v455
      %v457 = vpop.f32.mrf.mxu0
      %458 = vmatprep.mubr.f32.mxu0 0.0
      %459 = vmatmul.mubr.f32.gmra.mxu0 %v339
      %v460 = vpop.f32.mrf.mxu0
      %v461 = vadd.f32 %v362, %v460
      %v462 = vpop.f32.mrf.mxu0
      %463 = vmatprep.mubr.f32.mxu0 0.0
      %464 = vmatmul.mubr.f32.gmra.mxu0 %v340
      %v465 = vpop.f32.mrf.mxu0
      %v466 = vadd.f32 %v362, %v465
      %v467 = vpop.f32.mrf.mxu0
      %468 = vdwg.mxu0
      %v469 = vmax.f32 %v431, 0.0
      %v470 = vmax.f32 %v436, 0.0
      %v471 = vmax.f32 %v441, 0.0
      %v472 = vmax.f32 %v446, 0.0
      %v473 = vmax.f32 %v451, 0.0
      %v474 = vmax.f32 %v456, 0.0
      %v475 = vmax.f32 %v461, 0.0
      %v476 = vmax.f32 %v466, 0.0
      %477 = vst [vmem:[#allocation2] sm:$0xff] 0.0
      %478 = vst [vmem:[#allocation2 + $0x8] sm:$0x3] 0.0
      %479 = vst [vmem:[#allocation2 + $0x10] sm:$0xff] 0.0
      %480 = vst [vmem:[#allocation2 + $0x18] sm:$0x3] 0.0
      %481 = vst [vmem:[#allocation2 + $0x20] sm:$0xff] 0.0
      %482 = vst [vmem:[#allocation2 + $0x28] sm:$0x3] 0.0
      %483 = vst [vmem:[#allocation2 + $0x30] sm:$0xff] 0.0
      %484 = vst [vmem:[#allocation2 + $0x38] sm:$0x3] 0.0
      %485 = vst [vmem:[#allocation2 + $0x40] sm:$0xff] 0.0
      %486 = vst [vmem:[#allocation2 + $0x48] sm:$0x3] 0.0
      %487 = vst [vmem:[#allocation2 + $0x50] sm:$0xff] 0.0
      %488 = vst [vmem:[#allocation2 + $0x58] sm:$0x3] 0.0
      %489 = vst [vmem:[#allocation2 + $0x60] sm:$0xff] 0.0
      %490 = vst [vmem:[#allocation2 + $0x68] sm:$0x3] 0.0
      %491 = vst [vmem:[#allocation2 + $0x70] sm:$0xff] 0.0
      %492 = vst [vmem:[#allocation2 + $0x78] sm:$0x3] 0.0
      %493 = vst [vmem:[#allocation2 + $0x80] sm:$0xff] 0.0
      %494 = vst [vmem:[#allocation2 + $0x88] sm:$0x3] 0.0
      %495 = vst [vmem:[#allocation2 + $0x90] sm:$0xff] 0.0
      %496 = vst [vmem:[#allocation2 + $0x98] sm:$0x3] 0.0
      %s497 = scalar_lea.vmem [#allocation2], 16
      %498 = vst [vmem:[%s497 + $0x1] sm:$0xff] %v469
      %499 = vst [vmem:[%s497 + $0x11] sm:$0xff] %v470
      %500 = vst [vmem:[%s497 + $0x21] sm:$0xff] %v471
      %501 = vst [vmem:[%s497 + $0x31] sm:$0xff] %v472
      %502 = vst [vmem:[%s497 + $0x41] sm:$0xff] %v473
      %503 = vst [vmem:[%s497 + $0x51] sm:$0xff] %v474
      %504 = vst [vmem:[%s497 + $0x61] sm:$0xff] %v475
      %505 = vst [vmem:[%s497 + $0x71] sm:$0xff] %v476
      %v506 = vld [vmem:[%s7] sm:$0xff]
      %v507 = vld [vmem:[%s7 + $0x8] sm:$0xff]
      %v508 = vld [vmem:[%s7 + $0x10] sm:$0xff]
      %v509 = vld [vmem:[%s7 + $0x18] sm:$0xff]
      %v510 = vld [vmem:[%s7 + $0x20] sm:$0xff]
      %v511 = vld [vmem:[%s7 + $0x28] sm:$0xff]
      %v512 = vld [vmem:[%s7 + $0x30] sm:$0xff]
      %v513 = vld [vmem:[%s7 + $0x38] sm:$0xff]
      %v514 = vld [vmem:[%s7 + $0x40] sm:$0xff]
      %v515 = vld [vmem:[%s7 + $0x48] sm:$0xff]
      %v516 = vld [vmem:[%s7 + $0x50] sm:$0xff]
      %v517 = vld [vmem:[%s7 + $0x58] sm:$0xff]
      %v518 = vld [vmem:[%s7 + $0x60] sm:$0xff]
      %v519 = vld [vmem:[%s7 + $0x68] sm:$0xff]
      %v520 = vld [vmem:[%s7 + $0x70] sm:$0xff]
      %v521 = vld [vmem:[%s7 + $0x78] sm:$0xff]
      %v522 = vld [vmem:[%s8] sm:$0x1]
      %v524 = vlaneseq
      %v525 = vshrl.u32 %v524, 7
      %v526 = vsub.s32 0, %v525
      %v527 = vrot.slane %v522, %v526
      %529 = vmatprep.subr.mxu0 0.0
      %530 = vmatpush1.msra.mxu0 %v521
      %531 = vmatprep.subr.mxu0 0.0
      %532 = vmatpush1.msra.mxu0 %v520
      %533 = vmatprep.subr.mxu0 0.0
      %534 = vmatpush1.msra.mxu0 %v519
      %535 = vmatprep.subr.mxu0 0.0
      %536 = vmatpush1.msra.mxu0 %v518
      %537 = vmatprep.subr.mxu0 0.0
      %538 = vmatpush1.msra.mxu0 %v517
      %539 = vmatprep.subr.mxu0 0.0
      %540 = vmatpush1.msra.mxu0 %v516
      %541 = vmatprep.subr.mxu0 0.0
      %542 = vmatpush1.msra.mxu0 %v515
      %543 = vmatprep.subr.mxu0 0.0
      %544 = vmatpush1.msra.mxu0 %v514
      %545 = vmatprep.subr.mxu0 0.0
      %546 = vmatpush1.msra.mxu0 %v513
      %547 = vmatprep.subr.mxu0 0.0
      %548 = vmatpush1.msra.mxu0 %v512
      %549 = vmatprep.subr.mxu0 0.0
      %550 = vmatpush1.msra.mxu0 %v511
      %551 = vmatprep.subr.mxu0 0.0
      %552 = vmatpush1.msra.mxu0 %v510
      %553 = vmatprep.subr.mxu0 0.0
      %554 = vmatpush1.msra.mxu0 %v509
      %555 = vmatprep.subr.mxu0 0.0
      %556 = vmatpush1.msra.mxu0 %v508
      %557 = vmatprep.subr.mxu0 0.0
      %558 = vmatpush1.msra.mxu0 %v507
      %559 = vmatprep.subr.mxu0 0.0
      %560 = vmatpush1.msra.mxu0 %v506
      %561 = vmatprep.subr.mxu0 0.0
      %562 = vmatpush2.msra.mxu0 0.0
      %563 = vmatprep.subr.mxu0 0.0
      %564 = vmatpush2.msra.mxu0 0.0
      %565 = vmatprep.subr.mxu0 0.0
      %566 = vmatpush2.msra.mxu0 0.0
      %567 = vmatprep.subr.mxu0 0.0
      %568 = vmatpush2.msra.mxu0 0.0
      %569 = vmatprep.subr.mxu0 0.0
      %570 = vmatpush2.msra.mxu0 0.0
      %571 = vmatprep.subr.mxu0 0.0
      %572 = vmatpush2.msra.mxu0 0.0
      %573 = vmatprep.subr.mxu0 0.0
      %574 = vmatpush2.msra.mxu0 0.0
      %575 = vmatprep.subr.mxu0 0.0
      %576 = vmatpush2.msra.mxu0 0.0
      %577 = vmatprep.subr.mxu0 0.0
      %578 = vmatpush2.msra.mxu0 0.0
      %579 = vmatprep.subr.mxu0 0.0
      %580 = vmatpush2.msra.mxu0 0.0
      %581 = vmatprep.subr.mxu0 0.0
      %582 = vmatpush2.msra.mxu0 0.0
      %583 = vmatprep.subr.mxu0 0.0
      %584 = vmatpush2.msra.mxu0 0.0
      %585 = vmatprep.subr.mxu0 0.0
      %586 = vmatpush2.msra.mxu0 0.0
      %587 = vmatprep.subr.mxu0 0.0
      %588 = vmatpush2.msra.mxu0 0.0
      %589 = vmatprep.subr.mxu0 0.0
      %590 = vmatpush2.msra.mxu0 0.0
      %591 = vmatprep.subr.mxu0 0.0
      %592 = vmatpush2.msra.mxu0 0.0
      %593 = vmatprep.mubr.f32.mxu0 0.0
      %594 = vmatmul.mubr.f32.gmra.mxu0 %v333
      %v595 = vpop.f32.mrf.mxu0
      %v596 = vadd.f32 %v527, %v595
      %v597 = vpop.f32.mrf.mxu0
      %598 = vmatprep.mubr.f32.mxu0 0.0
      %599 = vmatmul.mubr.f32.gmra.mxu0 %v334
      %v600 = vpop.f32.mrf.mxu0
      %v601 = vadd.f32 %v527, %v600
      %v602 = vpop.f32.mrf.mxu0
      %603 = vmatprep.mubr.f32.mxu0 0.0
      %604 = vmatmul.mubr.f32.gmra.mxu0 %v335
      %v605 = vpop.f32.mrf.mxu0
      %v606 = vadd.f32 %v527, %v605
      %v607 = vpop.f32.mrf.mxu0
      %608 = vmatprep.mubr.f32.mxu0 0.0
      %609 = vmatmul.mubr.f32.gmra.mxu0 %v336
      %v610 = vpop.f32.mrf.mxu0
      %v611 = vadd.f32 %v527, %v610
      %v612 = vpop.f32.mrf.mxu0
      %613 = vmatprep.mubr.f32.mxu0 0.0
      %614 = vmatmul.mubr.f32.gmra.mxu0 %v337
      %v615 = vpop.f32.mrf.mxu0
      %v616 = vadd.f32 %v527, %v615
      %v617 = vpop.f32.mrf.mxu0
      %618 = vmatprep.mubr.f32.mxu0 0.0
      %619 = vmatmul.mubr.f32.gmra.mxu0 %v338
      %v620 = vpop.f32.mrf.mxu0
      %v621 = vadd.f32 %v527, %v620
      %v622 = vpop.f32.mrf.mxu0
      %623 = vmatprep.mubr.f32.mxu0 0.0
      %624 = vmatmul.mubr.f32.gmra.mxu0 %v339
      %v625 = vpop.f32.mrf.mxu0
      %v626 = vadd.f32 %v527, %v625
      %v627 = vpop.f32.mrf.mxu0
      %628 = vmatprep.mubr.f32.mxu0 0.0
      %629 = vmatmul.mubr.f32.gmra.mxu0 %v340
      %v630 = vpop.f32.mrf.mxu0
      %v631 = vadd.f32 %v527, %v630
      %v632 = vpop.f32.mrf.mxu0
      %633 = vdwg.mxu0
      %v634 = vld [vmem:[#allocation2] sm:$0xff]
      %v635 = vld [vmem:[#allocation2 + $0x10] sm:$0xff]
      %v636 = vld [vmem:[#allocation2 + $0x20] sm:$0xff]
      %v637 = vld [vmem:[#allocation2 + $0x30] sm:$0xff]
      %v638 = vld [vmem:[#allocation2 + $0x40] sm:$0xff]
      %v639 = vld [vmem:[#allocation2 + $0x50] sm:$0xff]
      %v640 = vld [vmem:[#allocation2 + $0x60] sm:$0xff]
      %v641 = vld [vmem:[#allocation2 + $0x70] sm:$0xff]
      %v642 = vld [vmem:[%s3] sm:$0xff]
      %v643 = vld [vmem:[%s3 + $0x8] sm:$0xff]
      %v644 = vld [vmem:[%s3 + $0x10] sm:$0xff]
      %v645 = vld [vmem:[%s3 + $0x18] sm:$0xff]
      %v646 = vld [vmem:[%s3 + $0x20] sm:$0xff]
      %v647 = vld [vmem:[%s3 + $0x28] sm:$0xff]
      %v648 = vld [vmem:[%s3 + $0x30] sm:$0xff]
      %v649 = vld [vmem:[%s3 + $0x38] sm:$0xff]
      %v650 = vld [vmem:[%s3 + $0x40] sm:$0xff]
      %v651 = vld [vmem:[%s3 + $0x48] sm:$0xff]
      %v652 = vld [vmem:[%s3 + $0x50] sm:$0xff]
      %v653 = vld [vmem:[%s3 + $0x58] sm:$0xff]
      %v654 = vld [vmem:[%s3 + $0x60] sm:$0xff]
      %v655 = vld [vmem:[%s3 + $0x68] sm:$0xff]
      %v656 = vld [vmem:[%s3 + $0x70] sm:$0xff]
      %v657 = vld [vmem:[%s3 + $0x78] sm:$0xff]
      %v658 = vld [vmem:[#allocation2 + $0x1] sm:$0xff]
      %v659 = vld [vmem:[#allocation2 + $0x11] sm:$0xff]
      %v660 = vld [vmem:[#allocation2 + $0x21] sm:$0xff]
      %v661 = vld [vmem:[#allocation2 + $0x31] sm:$0xff]
      %v662 = vld [vmem:[#allocation2 + $0x41] sm:$0xff]
      %v663 = vld [vmem:[#allocation2 + $0x51] sm:$0xff]
      %v664 = vld [vmem:[#allocation2 + $0x61] sm:$0xff]
      %v665 = vld [vmem:[#allocation2 + $0x71] sm:$0xff]
      %s666 = scalar_lea.vmem %s3, 128
      %v667 = vld [vmem:[%s666] sm:$0xff]
      %v668 = vld [vmem:[%s666 + $0x8] sm:$0xff]
      %v669 = vld [vmem:[%s666 + $0x10] sm:$0xff]
      %v670 = vld [vmem:[%s666 + $0x18] sm:$0xff]
      %v671 = vld [vmem:[%s666 + $0x20] sm:$0xff]
      %v672 = vld [vmem:[%s666 + $0x28] sm:$0xff]
      %v673 = vld [vmem:[%s666 + $0x30] sm:$0xff]
      %v674 = vld [vmem:[%s666 + $0x38] sm:$0xff]
      %v675 = vld [vmem:[%s666 + $0x40] sm:$0xff]
      %v676 = vld [vmem:[%s666 + $0x48] sm:$0xff]
      %v677 = vld [vmem:[%s666 + $0x50] sm:$0xff]
      %v678 = vld [vmem:[%s666 + $0x58] sm:$0xff]
      %v679 = vld [vmem:[%s666 + $0x60] sm:$0xff]
      %v680 = vld [vmem:[%s666 + $0x68] sm:$0xff]
      %v681 = vld [vmem:[%s666 + $0x70] sm:$0xff]
      %v682 = vld [vmem:[%s666 + $0x78] sm:$0xff]
      %683 = vmatprep.subr.mxu0 0.0
      %684 = vmatpush1.msra.mxu0 %v682
      %685 = vmatprep.subr.mxu0 0.0
      %686 = vmatpush1.msra.mxu0 %v681
      %687 = vmatprep.subr.mxu0 0.0
      %688 = vmatpush1.msra.mxu0 %v680
      %689 = vmatprep.subr.mxu0 0.0
      %690 = vmatpush1.msra.mxu0 %v679
      %691 = vmatprep.subr.mxu0 0.0
      %692 = vmatpush1.msra.mxu0 %v678
      %693 = vmatprep.subr.mxu0 0.0
      %694 = vmatpush1.msra.mxu0 %v677
      %695 = vmatprep.subr.mxu0 0.0
      %696 = vmatpush1.msra.mxu0 %v676
      %697 = vmatprep.subr.mxu0 0.0
      %698 = vmatpush1.msra.mxu0 %v675
      %699 = vmatprep.subr.mxu0 0.0
      %700 = vmatpush1.msra.mxu0 %v674
      %701 = vmatprep.subr.mxu0 0.0
      %702 = vmatpush1.msra.mxu0 %v673
      %703 = vmatprep.subr.mxu0 0.0
      %704 = vmatpush1.msra.mxu0 %v672
      %705 = vmatprep.subr.mxu0 0.0
      %706 = vmatpush1.msra.mxu0 %v671
      %707 = vmatprep.subr.mxu0 0.0
      %708 = vmatpush1.msra.mxu0 %v670
      %709 = vmatprep.subr.mxu0 0.0
      %710 = vmatpush1.msra.mxu0 %v669
      %711 = vmatprep.subr.mxu0 0.0
      %712 = vmatpush1.msra.mxu0 %v668
      %713 = vmatprep.subr.mxu0 0.0
      %714 = vmatpush1.msra.mxu0 %v667
      %715 = vmatprep.subr.mxu0 0.0
      %716 = vmatpush2.msra.mxu0 0.0
      %717 = vmatprep.subr.mxu0 0.0
      %718 = vmatpush2.msra.mxu0 0.0
      %719 = vmatprep.subr.mxu0 0.0
      %720 = vmatpush2.msra.mxu0 0.0
      %721 = vmatprep.subr.mxu0 0.0
      %722 = vmatpush2.msra.mxu0 0.0
      %723 = vmatprep.subr.mxu0 0.0
      %724 = vmatpush2.msra.mxu0 0.0
      %725 = vmatprep.subr.mxu0 0.0
      %726 = vmatpush2.msra.mxu0 0.0
      %727 = vmatprep.subr.mxu0 0.0
      %728 = vmatpush2.msra.mxu0 0.0
      %729 = vmatprep.subr.mxu0 0.0
      %730 = vmatpush2.msra.mxu0 0.0
      %731 = vmatprep.subr.mxu0 0.0
      %732 = vmatpush2.msra.mxu0 0.0
      %733 = vmatprep.subr.mxu0 0.0
      %734 = vmatpush2.msra.mxu0 0.0
      %735 = vmatprep.subr.mxu0 0.0
      %736 = vmatpush2.msra.mxu0 0.0
      %737 = vmatprep.subr.mxu0 0.0
      %738 = vmatpush2.msra.mxu0 0.0
      %739 = vmatprep.subr.mxu0 0.0
      %740 = vmatpush2.msra.mxu0 0.0
      %741 = vmatprep.subr.mxu0 0.0
      %742 = vmatpush2.msra.mxu0 0.0
      %743 = vmatprep.subr.mxu0 0.0
      %744 = vmatpush2.msra.mxu0 0.0
      %745 = vmatprep.subr.mxu0 0.0
      %746 = vmatpush2.msra.mxu0 0.0
      %747 = vmatprep.mubr.f32.mxu0 0.0
      %748 = vmatmul.mubr.f32.gmra.mxu0 %v658
      %v749 = vpop.f32.mrf.mxu0
      %v750 = vadd.f32 0.0, %v749
      %v751 = vpop.f32.mrf.mxu0
      %752 = vmatprep.mubr.f32.mxu0 0.0
      %753 = vmatmul.mubr.f32.gmra.mxu0 %v659
      %v754 = vpop.f32.mrf.mxu0
      %v755 = vadd.f32 0.0, %v754
      %v756 = vpop.f32.mrf.mxu0
      %757 = vmatprep.mubr.f32.mxu0 0.0
      %758 = vmatmul.mubr.f32.gmra.mxu0 %v660
      %v759 = vpop.f32.mrf.mxu0
      %v760 = vadd.f32 0.0, %v759
      %v761 = vpop.f32.mrf.mxu0
      %762 = vmatprep.mubr.f32.mxu0 0.0
      %763 = vmatmul.mubr.f32.gmra.mxu0 %v661
      %v764 = vpop.f32.mrf.mxu0
      %v765 = vadd.f32 0.0, %v764
      %v766 = vpop.f32.mrf.mxu0
      %767 = vmatprep.mubr.f32.mxu0 0.0
      %768 = vmatmul.mubr.f32.gmra.mxu0 %v662
      %v769 = vpop.f32.mrf.mxu0
      %v770 = vadd.f32 0.0, %v769
      %v771 = vpop.f32.mrf.mxu0
      %772 = vmatprep.mubr.f32.mxu0 0.0
      %773 = vmatmul.mubr.f32.gmra.mxu0 %v663
      %v774 = vpop.f32.mrf.mxu0
      %v775 = vadd.f32 0.0, %v774
      %v776 = vpop.f32.mrf.mxu0
      %777 = vmatprep.mubr.f32.mxu0 0.0
      %778 = vmatmul.mubr.f32.gmra.mxu0 %v664
      %v779 = vpop.f32.mrf.mxu0
      %v780 = vadd.f32 0.0, %v779
      %v781 = vpop.f32.mrf.mxu0
      %782 = vmatprep.mubr.f32.mxu0 0.0
      %783 = vmatmul.mubr.f32.gmra.mxu0 %v665
      %v784 = vpop.f32.mrf.mxu0
      %v785 = vadd.f32 0.0, %v784
      %v786 = vpop.f32.mrf.mxu0
      %787 = vdwg.mxu0
      %788 = vmatprep.subr.mxu0 0.0
      %789 = vmatpush1.msra.mxu0 %v657
      %790 = vmatprep.subr.mxu0 0.0
      %791 = vmatpush1.msra.mxu0 %v656
      %792 = vmatprep.subr.mxu0 0.0
      %793 = vmatpush1.msra.mxu0 %v655
      %794 = vmatprep.subr.mxu0 0.0
      %795 = vmatpush1.msra.mxu0 %v654
      %796 = vmatprep.subr.mxu0 0.0
      %797 = vmatpush1.msra.mxu0 %v653
      %798 = vmatprep.subr.mxu0 0.0
      %799 = vmatpush1.msra.mxu0 %v652
      %800 = vmatprep.subr.mxu0 0.0
      %801 = vmatpush1.msra.mxu0 %v651
      %802 = vmatprep.subr.mxu0 0.0
      %803 = vmatpush1.msra.mxu0 %v650
      %804 = vmatprep.subr.mxu0 0.0
      %805 = vmatpush1.msra.mxu0 %v649
      %806 = vmatprep.subr.mxu0 0.0
      %807 = vmatpush1.msra.mxu0 %v648
      %808 = vmatprep.subr.mxu0 0.0
      %809 = vmatpush1.msra.mxu0 %v647
      %810 = vmatprep.subr.mxu0 0.0
      %811 = vmatpush1.msra.mxu0 %v646
      %812 = vmatprep.subr.mxu0 0.0
      %813 = vmatpush1.msra.mxu0 %v645
      %814 = vmatprep.subr.mxu0 0.0
      %815 = vmatpush1.msra.mxu0 %v644
      %816 = vmatprep.subr.mxu0 0.0
      %817 = vmatpush1.msra.mxu0 %v643
      %818 = vmatprep.subr.mxu0 0.0
      %819 = vmatpush1.msra.mxu0 %v642
      %820 = vmatprep.subr.mxu0 0.0
      %821 = vmatpush2.msra.mxu0 0.0
      %822 = vmatprep.subr.mxu0 0.0
      %823 = vmatpush2.msra.mxu0 0.0
      %824 = vmatprep.subr.mxu0 0.0
      %825 = vmatpush2.msra.mxu0 0.0
      %826 = vmatprep.subr.mxu0 0.0
      %827 = vmatpush2.msra.mxu0 0.0
      %828 = vmatprep.subr.mxu0 0.0
      %829 = vmatpush2.msra.mxu0 0.0
      %830 = vmatprep.subr.mxu0 0.0
      %831 = vmatpush2.msra.mxu0 0.0
      %832 = vmatprep.subr.mxu0 0.0
      %833 = vmatpush2.msra.mxu0 0.0
      %834 = vmatprep.subr.mxu0 0.0
      %835 = vmatpush2.msra.mxu0 0.0
      %836 = vmatprep.subr.mxu0 0.0
      %837 = vmatpush2.msra.mxu0 0.0
      %838 = vmatprep.subr.mxu0 0.0
      %839 = vmatpush2.msra.mxu0 0.0
      %840 = vmatprep.subr.mxu0 0.0
      %841 = vmatpush2.msra.mxu0 0.0
      %842 = vmatprep.subr.mxu0 0.0
      %843 = vmatpush2.msra.mxu0 0.0
      %844 = vmatprep.subr.mxu0 0.0
      %845 = vmatpush2.msra.mxu0 0.0
      %846 = vmatprep.subr.mxu0 0.0
      %847 = vmatpush2.msra.mxu0 0.0
      %848 = vmatprep.subr.mxu0 0.0
      %849 = vmatpush2.msra.mxu0 0.0
      %850 = vmatprep.subr.mxu0 0.0
      %851 = vmatpush2.msra.mxu0 0.0
      %852 = vmatprep.mubr.f32.mxu0 0.0
      %853 = vmatmul.mubr.f32.gmra.mxu0 %v634
      %v854 = vpop.f32.mrf.mxu0
      %v855 = vadd.f32 %v750, %v854
      %v856 = vpop.f32.mrf.mxu0
      %857 = vmatprep.mubr.f32.mxu0 0.0
      %858 = vmatmul.mubr.f32.gmra.mxu0 %v635
      %v859 = vpop.f32.mrf.mxu0
      %v860 = vadd.f32 %v755, %v859
      %v861 = vpop.f32.mrf.mxu0
      %862 = vmatprep.mubr.f32.mxu0 0.0
      %863 = vmatmul.mubr.f32.gmra.mxu0 %v636
      %v864 = vpop.f32.mrf.mxu0
      %v865 = vadd.f32 %v760, %v864
      %v866 = vpop.f32.mrf.mxu0
      %867 = vmatprep.mubr.f32.mxu0 0.0
      %868 = vmatmul.mubr.f32.gmra.mxu0 %v637
      %v869 = vpop.f32.mrf.mxu0
      %v870 = vadd.f32 %v765, %v869
      %v871 = vpop.f32.mrf.mxu0
      %872 = vmatprep.mubr.f32.mxu0 0.0
      %873 = vmatmul.mubr.f32.gmra.mxu0 %v638
      %v874 = vpop.f32.mrf.mxu0
      %v875 = vadd.f32 %v770, %v874
      %v876 = vpop.f32.mrf.mxu0
      %877 = vmatprep.mubr.f32.mxu0 0.0
      %878 = vmatmul.mubr.f32.gmra.mxu0 %v639
      %v879 = vpop.f32.mrf.mxu0
      %v880 = vadd.f32 %v775, %v879
      %v881 = vpop.f32.mrf.mxu0
      %882 = vmatprep.mubr.f32.mxu0 0.0
      %883 = vmatmul.mubr.f32.gmra.mxu0 %v640
      %v884 = vpop.f32.mrf.mxu0
      %v885 = vadd.f32 %v780, %v884
      %v886 = vpop.f32.mrf.mxu0
      %887 = vmatprep.mubr.f32.mxu0 0.0
      %888 = vmatmul.mubr.f32.gmra.mxu0 %v641
      %v889 = vpop.f32.mrf.mxu0
      %v890 = vadd.f32 %v785, %v889
      %v891 = vpop.f32.mrf.mxu0
      %892 = vdwg.mxu0
      %v893 = vld [vmem:[#allocation2 + $0x2] sm:$0xff]
      %v894 = vld [vmem:[#allocation2 + $0x12] sm:$0xff]
      %v895 = vld [vmem:[#allocation2 + $0x22] sm:$0xff]
      %v896 = vld [vmem:[#allocation2 + $0x32] sm:$0xff]
      %v897 = vld [vmem:[#allocation2 + $0x42] sm:$0xff]
      %v898 = vld [vmem:[#allocation2 + $0x52] sm:$0xff]
      %v899 = vld [vmem:[#allocation2 + $0x62] sm:$0xff]
      %v900 = vld [vmem:[#allocation2 + $0x72] sm:$0xff]
      %s901 = scalar_lea.vmem %s3, 256
      %v902 = vld [vmem:[%s901] sm:$0xff]
      %v903 = vld [vmem:[%s901 + $0x8] sm:$0xff]
      %v904 = vld [vmem:[%s901 + $0x10] sm:$0xff]
      %v905 = vld [vmem:[%s901 + $0x18] sm:$0xff]
      %v906 = vld [vmem:[%s901 + $0x20] sm:$0xff]
      %v907 = vld [vmem:[%s901 + $0x28] sm:$0xff]
      %v908 = vld [vmem:[%s901 + $0x30] sm:$0xff]
      %v909 = vld [vmem:[%s901 + $0x38] sm:$0xff]
      %v910 = vld [vmem:[%s901 + $0x40] sm:$0xff]
      %v911 = vld [vmem:[%s901 + $0x48] sm:$0xff]
      %v912 = vld [vmem:[%s901 + $0x50] sm:$0xff]
      %v913 = vld [vmem:[%s901 + $0x58] sm:$0xff]
      %v914 = vld [vmem:[%s901 + $0x60] sm:$0xff]
      %v915 = vld [vmem:[%s901 + $0x68] sm:$0xff]
      %v916 = vld [vmem:[%s901 + $0x70] sm:$0xff]
      %v917 = vld [vmem:[%s901 + $0x78] sm:$0xff]
      %918 = vmatprep.subr.mxu0 0.0
      %919 = vmatpush1.msra.mxu0 %v917
      %920 = vmatprep.subr.mxu0 0.0
      %921 = vmatpush1.msra.mxu0 %v916
      %922 = vmatprep.subr.mxu0 0.0
      %923 = vmatpush1.msra.mxu0 %v915
      %924 = vmatprep.subr.mxu0 0.0
      %925 = vmatpush1.msra.mxu0 %v914
      %926 = vmatprep.subr.mxu0 0.0
      %927 = vmatpush1.msra.mxu0 %v913
      %928 = vmatprep.subr.mxu0 0.0
      %929 = vmatpush1.msra.mxu0 %v912
      %930 = vmatprep.subr.mxu0 0.0
      %931 = vmatpush1.msra.mxu0 %v911
      %932 = vmatprep.subr.mxu0 0.0
      %933 = vmatpush1.msra.mxu0 %v910
      %934 = vmatprep.subr.mxu0 0.0
      %935 = vmatpush1.msra.mxu0 %v909
      %936 = vmatprep.subr.mxu0 0.0
      %937 = vmatpush1.msra.mxu0 %v908
      %938 = vmatprep.subr.mxu0 0.0
      %939 = vmatpush1.msra.mxu0 %v907
      %940 = vmatprep.subr.mxu0 0.0
      %941 = vmatpush1.msra.mxu0 %v906
      %942 = vmatprep.subr.mxu0 0.0
      %943 = vmatpush1.msra.mxu0 %v905
      %944 = vmatprep.subr.mxu0 0.0
      %945 = vmatpush1.msra.mxu0 %v904
      %946 = vmatprep.subr.mxu0 0.0
      %947 = vmatpush1.msra.mxu0 %v903
      %948 = vmatprep.subr.mxu0 0.0
      %949 = vmatpush1.msra.mxu0 %v902
      %950 = vmatprep.subr.mxu0 0.0
      %951 = vmatpush2.msra.mxu0 0.0
      %952 = vmatprep.subr.mxu0 0.0
      %953 = vmatpush2.msra.mxu0 0.0
      %954 = vmatprep.subr.mxu0 0.0
      %955 = vmatpush2.msra.mxu0 0.0
      %956 = vmatprep.subr.mxu0 0.0
      %957 = vmatpush2.msra.mxu0 0.0
      %958 = vmatprep.subr.mxu0 0.0
      %959 = vmatpush2.msra.mxu0 0.0
      %960 = vmatprep.subr.mxu0 0.0
      %961 = vmatpush2.msra.mxu0 0.0
      %962 = vmatprep.subr.mxu0 0.0
      %963 = vmatpush2.msra.mxu0 0.0
      %964 = vmatprep.subr.mxu0 0.0
      %965 = vmatpush2.msra.mxu0 0.0
      %966 = vmatprep.subr.mxu0 0.0
      %967 = vmatpush2.msra.mxu0 0.0
      %968 = vmatprep.subr.mxu0 0.0
      %969 = vmatpush2.msra.mxu0 0.0
      %970 = vmatprep.subr.mxu0 0.0
      %971 = vmatpush2.msra.mxu0 0.0
      %972 = vmatprep.subr.mxu0 0.0
      %973 = vmatpush2.msra.mxu0 0.0
      %974 = vmatprep.subr.mxu0 0.0
      %975 = vmatpush2.msra.mxu0 0.0
      %976 = vmatprep.subr.mxu0 0.0
      %977 = vmatpush2.msra.mxu0 0.0
      %978 = vmatprep.subr.mxu0 0.0
      %979 = vmatpush2.msra.mxu0 0.0
      %980 = vmatprep.subr.mxu0 0.0
      %981 = vmatpush2.msra.mxu0 0.0
      %982 = vmatprep.mubr.f32.mxu0 0.0
      %983 = vmatmul.mubr.f32.gmra.mxu0 %v893
      %v984 = vpop.f32.mrf.mxu0
      %v985 = vadd.f32 0.0, %v984
      %v986 = vpop.f32.mrf.mxu0
      %987 = vmatprep.mubr.f32.mxu0 0.0
      %988 = vmatmul.mubr.f32.gmra.mxu0 %v894
      %v989 = vpop.f32.mrf.mxu0
      %v990 = vadd.f32 0.0, %v989
      %v991 = vpop.f32.mrf.mxu0
      %992 = vmatprep.mubr.f32.mxu0 0.0
      %993 = vmatmul.mubr.f32.gmra.mxu0 %v895
      %v994 = vpop.f32.mrf.mxu0
      %v995 = vadd.f32 0.0, %v994
      %v996 = vpop.f32.mrf.mxu0
      %997 = vmatprep.mubr.f32.mxu0 0.0
      %998 = vmatmul.mubr.f32.gmra.mxu0 %v896
      %v999 = vpop.f32.mrf.mxu0
      %v1000 = vadd.f32 0.0, %v999
      %v1001 = vpop.f32.mrf.mxu0
      %1002 = vmatprep.mubr.f32.mxu0 0.0
      %1003 = vmatmul.mubr.f32.gmra.mxu0 %v897
      %v1004 = vpop.f32.mrf.mxu0
      %v1005 = vadd.f32 0.0, %v1004
      %v1006 = vpop.f32.mrf.mxu0
      %1007 = vmatprep.mubr.f32.mxu0 0.0
      %1008 = vmatmul.mubr.f32.gmra.mxu0 %v898
      %v1009 = vpop.f32.mrf.mxu0
      %v1010 = vadd.f32 0.0, %v1009
      %v1011 = vpop.f32.mrf.mxu0
      %1012 = vmatprep.mubr.f32.mxu0 0.0
      %1013 = vmatmul.mubr.f32.gmra.mxu0 %v899
      %v1014 = vpop.f32.mrf.mxu0
      %v1015 = vadd.f32 0.0, %v1014
      %v1016 = vpop.f32.mrf.mxu0
      %1017 = vmatprep.mubr.f32.mxu0 0.0
      %1018 = vmatmul.mubr.f32.gmra.mxu0 %v900
      %v1019 = vpop.f32.mrf.mxu0
      %v1020 = vadd.f32 0.0, %v1019
      %v1021 = vpop.f32.mrf.mxu0
      %1022 = vdwg.mxu0
      %v1023 = vadd.f32 %v855, %v985
      %v1024 = vadd.f32 %v860, %v990
      %v1025 = vadd.f32 %v865, %v995
      %v1026 = vadd.f32 %v870, %v1000
      %v1027 = vadd.f32 %v875, %v1005
      %v1028 = vadd.f32 %v880, %v1010
      %v1029 = vadd.f32 %v885, %v1015
      %v1030 = vadd.f32 %v890, %v1020
      %v1031 = vld [vmem:[%s497] sm:$0xff]
      %v1032 = vld [vmem:[%s497 + $0x10] sm:$0xff]
      %v1033 = vld [vmem:[%s497 + $0x20] sm:$0xff]
      %v1034 = vld [vmem:[%s497 + $0x30] sm:$0xff]
      %v1035 = vld [vmem:[%s497 + $0x40] sm:$0xff]
      %v1036 = vld [vmem:[%s497 + $0x50] sm:$0xff]
      %v1037 = vld [vmem:[%s497 + $0x60] sm:$0xff]
      %v1038 = vld [vmem:[%s497 + $0x70] sm:$0xff]
      %s1039 = scalar_lea.vmem %s3, 384
      %v1040 = vld [vmem:[%s1039] sm:$0xff]
      %v1041 = vld [vmem:[%s1039 + $0x8] sm:$0xff]
      %v1042 = vld [vmem:[%s1039 + $0x10] sm:$0xff]
      %v1043 = vld [vmem:[%s1039 + $0x18] sm:$0xff]
      %v1044 = vld [vmem:[%s1039 + $0x20] sm:$0xff]
      %v1045 = vld [vmem:[%s1039 + $0x28] sm:$0xff]
      %v1046 = vld [vmem:[%s1039 + $0x30] sm:$0xff]
      %v1047 = vld [vmem:[%s1039 + $0x38] sm:$0xff]
      %v1048 = vld [vmem:[%s1039 + $0x40] sm:$0xff]
      %v1049 = vld [vmem:[%s1039 + $0x48] sm:$0xff]
      %v1050 = vld [vmem:[%s1039 + $0x50] sm:$0xff]
      %v1051 = vld [vmem:[%s1039 + $0x58] sm:$0xff]
      %v1052 = vld [vmem:[%s1039 + $0x60] sm:$0xff]
      %v1053 = vld [vmem:[%s1039 + $0x68] sm:$0xff]
      %v1054 = vld [vmem:[%s1039 + $0x70] sm:$0xff]
      %v1055 = vld [vmem:[%s1039 + $0x78] sm:$0xff]
      %1056 = vmatprep.subr.mxu0 0.0
      %1057 = vmatpush1.msra.mxu0 %v1055
      %1058 = vmatprep.subr.mxu0 0.0
      %1059 = vmatpush1.msra.mxu0 %v1054
      %1060 = vmatprep.subr.mxu0 0.0
      %1061 = vmatpush1.msra.mxu0 %v1053
      %1062 = vmatprep.subr.mxu0 0.0
      %1063 = vmatpush1.msra.mxu0 %v1052
      %1064 = vmatprep.subr.mxu0 0.0
      %1065 = vmatpush1.msra.mxu0 %v1051
      %1066 = vmatprep.subr.mxu0 0.0
      %1067 = vmatpush1.msra.mxu0 %v1050
      %1068 = vmatprep.subr.mxu0 0.0
      %1069 = vmatpush1.msra.mxu0 %v1049
      %1070 = vmatprep.subr.mxu0 0.0
      %1071 = vmatpush1.msra.mxu0 %v1048
      %1072 = vmatprep.subr.mxu0 0.0
      %1073 = vmatpush1.msra.mxu0 %v1047
      %1074 = vmatprep.subr.mxu0 0.0
      %1075 = vmatpush1.msra.mxu0 %v1046
      %1076 = vmatprep.subr.mxu0 0.0
      %1077 = vmatpush1.msra.mxu0 %v1045
      %1078 = vmatprep.subr.mxu0 0.0
      %1079 = vmatpush1.msra.mxu0 %v1044
      %1080 = vmatprep.subr.mxu0 0.0
      %1081 = vmatpush1.msra.mxu0 %v1043
      %1082 = vmatprep.subr.mxu0 0.0
      %1083 = vmatpush1.msra.mxu0 %v1042
      %1084 = vmatprep.subr.mxu0 0.0
      %1085 = vmatpush1.msra.mxu0 %v1041
      %1086 = vmatprep.subr.mxu0 0.0
      %1087 = vmatpush1.msra.mxu0 %v1040
      %1088 = vmatprep.subr.mxu0 0.0
      %1089 = vmatpush2.msra.mxu0 0.0
      %1090 = vmatprep.subr.mxu0 0.0
      %1091 = vmatpush2.msra.mxu0 0.0
      %1092 = vmatprep.subr.mxu0 0.0
      %1093 = vmatpush2.msra.mxu0 0.0
      %1094 = vmatprep.subr.mxu0 0.0
      %1095 = vmatpush2.msra.mxu0 0.0
      %1096 = vmatprep.subr.mxu0 0.0
      %1097 = vmatpush2.msra.mxu0 0.0
      %1098 = vmatprep.subr.mxu0 0.0
      %1099 = vmatpush2.msra.mxu0 0.0
      %1100 = vmatprep.subr.mxu0 0.0
      %1101 = vmatpush2.msra.mxu0 0.0
      %1102 = vmatprep.subr.mxu0 0.0
      %1103 = vmatpush2.msra.mxu0 0.0
      %1104 = vmatprep.subr.mxu0 0.0
      %1105 = vmatpush2.msra.mxu0 0.0
      %1106 = vmatprep.subr.mxu0 0.0
      %1107 = vmatpush2.msra.mxu0 0.0
      %1108 = vmatprep.subr.mxu0 0.0
      %1109 = vmatpush2.msra.mxu0 0.0
      %1110 = vmatprep.subr.mxu0 0.0
      %1111 = vmatpush2.msra.mxu0 0.0
      %1112 = vmatprep.subr.mxu0 0.0
      %1113 = vmatpush2.msra.mxu0 0.0
      %1114 = vmatprep.subr.mxu0 0.0
      %1115 = vmatpush2.msra.mxu0 0.0
      %1116 = vmatprep.subr.mxu0 0.0
      %1117 = vmatpush2.msra.mxu0 0.0
      %1118 = vmatprep.subr.mxu0 0.0
      %1119 = vmatpush2.msra.mxu0 0.0
      %1120 = vmatprep.mubr.f32.mxu0 0.0
      %1121 = vmatmul.mubr.f32.gmra.mxu0 %v1031
      %v1122 = vpop.f32.mrf.mxu0
      %v1123 = vadd.f32 0.0, %v1122
      %v1124 = vpop.f32.mrf.mxu0
      %1125 = vmatprep.mubr.f32.mxu0 0.0
      %1126 = vmatmul.mubr.f32.gmra.mxu0 %v1032
      %v1127 = vpop.f32.mrf.mxu0
      %v1128 = vadd.f32 0.0, %v1127
      %v1129 = vpop.f32.mrf.mxu0
      %1130 = vmatprep.mubr.f32.mxu0 0.0
      %1131 = vmatmul.mubr.f32.gmra.mxu0 %v1033
      %v1132 = vpop.f32.mrf.mxu0
      %v1133 = vadd.f32 0.0, %v1132
      %v1134 = vpop.f32.mrf.mxu0
      %1135 = vmatprep.mubr.f32.mxu0 0.0
      %1136 = vmatmul.mubr.f32.gmra.mxu0 %v1034
      %v1137 = vpop.f32.mrf.mxu0
      %v1138 = vadd.f32 0.0, %v1137
      %v1139 = vpop.f32.mrf.mxu0
      %1140 = vmatprep.mubr.f32.mxu0 0.0
      %1141 = vmatmul.mubr.f32.gmra.mxu0 %v1035
      %v1142 = vpop.f32.mrf.mxu0
      %v1143 = vadd.f32 0.0, %v1142
      %v1144 = vpop.f32.mrf.mxu0
      %1145 = vmatprep.mubr.f32.mxu0 0.0
      %1146 = vmatmul.mubr.f32.gmra.mxu0 %v1036
      %v1147 = vpop.f32.mrf.mxu0
      %v1148 = vadd.f32 0.0, %v1147
      %v1149 = vpop.f32.mrf.mxu0
      %1150 = vmatprep.mubr.f32.mxu0 0.0
      %1151 = vmatmul.mubr.f32.gmra.mxu0 %v1037
      %v1152 = vpop.f32.mrf.mxu0
      %v1153 = vadd.f32 0.0, %v1152
      %v1154 = vpop.f32.mrf.mxu0
      %1155 = vmatprep.mubr.f32.mxu0 0.0
      %1156 = vmatmul.mubr.f32.gmra.mxu0 %v1038
      %v1157 = vpop.f32.mrf.mxu0
      %v1158 = vadd.f32 0.0, %v1157
      %v1159 = vpop.f32.mrf.mxu0
      %1160 = vdwg.mxu0
      %v1161 = vadd.f32 %v1023, %v1123
      %v1162 = vadd.f32 %v1024, %v1128
      %v1163 = vadd.f32 %v1025, %v1133
      %v1164 = vadd.f32 %v1026, %v1138
      %v1165 = vadd.f32 %v1027, %v1143
      %v1166 = vadd.f32 %v1028, %v1148
      %v1167 = vadd.f32 %v1029, %v1153
      %v1168 = vadd.f32 %v1030, %v1158
      %v1169 = vld [vmem:[%s497 + $0x1] sm:$0xff]
      %v1170 = vld [vmem:[%s497 + $0x11] sm:$0xff]
      %v1171 = vld [vmem:[%s497 + $0x21] sm:$0xff]
      %v1172 = vld [vmem:[%s497 + $0x31] sm:$0xff]
      %v1173 = vld [vmem:[%s497 + $0x41] sm:$0xff]
      %v1174 = vld [vmem:[%s497 + $0x51] sm:$0xff]
      %v1175 = vld [vmem:[%s497 + $0x61] sm:$0xff]
      %v1176 = vld [vmem:[%s497 + $0x71] sm:$0xff]
      %s1177 = scalar_lea.vmem %s3, 512
      %v1178 = vld [vmem:[%s1177] sm:$0xff]
      %v1179 = vld [vmem:[%s1177 + $0x8] sm:$0xff]
      %v1180 = vld [vmem:[%s1177 + $0x10] sm:$0xff]
      %v1181 = vld [vmem:[%s1177 + $0x18] sm:$0xff]
      %v1182 = vld [vmem:[%s1177 + $0x20] sm:$0xff]
      %v1183 = vld [vmem:[%s1177 + $0x28] sm:$0xff]
      %v1184 = vld [vmem:[%s1177 + $0x30] sm:$0xff]
      %v1185 = vld [vmem:[%s1177 + $0x38] sm:$0xff]
      %v1186 = vld [vmem:[%s1177 + $0x40] sm:$0xff]
      %v1187 = vld [vmem:[%s1177 + $0x48] sm:$0xff]
      %v1188 = vld [vmem:[%s1177 + $0x50] sm:$0xff]
      %v1189 = vld [vmem:[%s1177 + $0x58] sm:$0xff]
      %v1190 = vld [vmem:[%s1177 + $0x60] sm:$0xff]
      %v1191 = vld [vmem:[%s1177 + $0x68] sm:$0xff]
      %v1192 = vld [vmem:[%s1177 + $0x70] sm:$0xff]
      %v1193 = vld [vmem:[%s1177 + $0x78] sm:$0xff]
      %1194 = vmatprep.subr.mxu0 0.0
      %1195 = vmatpush1.msra.mxu0 %v1193
      %1196 = vmatprep.subr.mxu0 0.0
      %1197 = vmatpush1.msra.mxu0 %v1192
      %1198 = vmatprep.subr.mxu0 0.0
      %1199 = vmatpush1.msra.mxu0 %v1191
      %1200 = vmatprep.subr.mxu0 0.0
      %1201 = vmatpush1.msra.mxu0 %v1190
      %1202 = vmatprep.subr.mxu0 0.0
      %1203 = vmatpush1.msra.mxu0 %v1189
      %1204 = vmatprep.subr.mxu0 0.0
      %1205 = vmatpush1.msra.mxu0 %v1188
      %1206 = vmatprep.subr.mxu0 0.0
      %1207 = vmatpush1.msra.mxu0 %v1187
      %1208 = vmatprep.subr.mxu0 0.0
      %1209 = vmatpush1.msra.mxu0 %v1186
      %1210 = vmatprep.subr.mxu0 0.0
      %1211 = vmatpush1.msra.mxu0 %v1185
      %1212 = vmatprep.subr.mxu0 0.0
      %1213 = vmatpush1.msra.mxu0 %v1184
      %1214 = vmatprep.subr.mxu0 0.0
      %1215 = vmatpush1.msra.mxu0 %v1183
      %1216 = vmatprep.subr.mxu0 0.0
      %1217 = vmatpush1.msra.mxu0 %v1182
      %1218 = vmatprep.subr.mxu0 0.0
      %1219 = vmatpush1.msra.mxu0 %v1181
      %1220 = vmatprep.subr.mxu0 0.0
      %1221 = vmatpush1.msra.mxu0 %v1180
      %1222 = vmatprep.subr.mxu0 0.0
      %1223 = vmatpush1.msra.mxu0 %v1179
      %1224 = vmatprep.subr.mxu0 0.0
      %1225 = vmatpush1.msra.mxu0 %v1178
      %1226 = vmatprep.subr.mxu0 0.0
      %1227 = vmatpush2.msra.mxu0 0.0
      %1228 = vmatprep.subr.mxu0 0.0
      %1229 = vmatpush2.msra.mxu0 0.0
      %1230 = vmatprep.subr.mxu0 0.0
      %1231 = vmatpush2.msra.mxu0 0.0
      %1232 = vmatprep.subr.mxu0 0.0
      %1233 = vmatpush2.msra.mxu0 0.0
      %1234 = vmatprep.subr.mxu0 0.0
      %1235 = vmatpush2.msra.mxu0 0.0
      %1236 = vmatprep.subr.mxu0 0.0
      %1237 = vmatpush2.msra.mxu0 0.0
      %1238 = vmatprep.subr.mxu0 0.0
      %1239 = vmatpush2.msra.mxu0 0.0
      %1240 = vmatprep.subr.mxu0 0.0
      %1241 = vmatpush2.msra.mxu0 0.0
      %1242 = vmatprep.subr.mxu0 0.0
      %1243 = vmatpush2.msra.mxu0 0.0
      %1244 = vmatprep.subr.mxu0 0.0
      %1245 = vmatpush2.msra.mxu0 0.0
      %1246 = vmatprep.subr.mxu0 0.0
      %1247 = vmatpush2.msra.mxu0 0.0
      %1248 = vmatprep.subr.mxu0 0.0
      %1249 = vmatpush2.msra.mxu0 0.0
      %1250 = vmatprep.subr.mxu0 0.0
      %1251 = vmatpush2.msra.mxu0 0.0
      %1252 = vmatprep.subr.mxu0 0.0
      %1253 = vmatpush2.msra.mxu0 0.0
      %1254 = vmatprep.subr.mxu0 0.0
      %1255 = vmatpush2.msra.mxu0 0.0
      %1256 = vmatprep.subr.mxu0 0.0
      %1257 = vmatpush2.msra.mxu0 0.0
      %1258 = vmatprep.mubr.f32.mxu0 0.0
      %1259 = vmatmul.mubr.f32.gmra.mxu0 %v1169
      %v1260 = vpop.f32.mrf.mxu0
      %v1261 = vadd.f32 0.0, %v1260
      %v1262 = vpop.f32.mrf.mxu0
      %1263 = vmatprep.mubr.f32.mxu0 0.0
      %1264 = vmatmul.mubr.f32.gmra.mxu0 %v1170
      %v1265 = vpop.f32.mrf.mxu0
      %v1266 = vadd.f32 0.0, %v1265
      %v1267 = vpop.f32.mrf.mxu0
      %1268 = vmatprep.mubr.f32.mxu0 0.0
      %1269 = vmatmul.mubr.f32.gmra.mxu0 %v1171
      %v1270 = vpop.f32.mrf.mxu0
      %v1271 = vadd.f32 0.0, %v1270
      %v1272 = vpop.f32.mrf.mxu0
      %1273 = vmatprep.mubr.f32.mxu0 0.0
      %1274 = vmatmul.mubr.f32.gmra.mxu0 %v1172
      %v1275 = vpop.f32.mrf.mxu0
      %v1276 = vadd.f32 0.0, %v1275
      %v1277 = vpop.f32.mrf.mxu0
      %1278 = vmatprep.mubr.f32.mxu0 0.0
      %1279 = vmatmul.mubr.f32.gmra.mxu0 %v1173
      %v1280 = vpop.f32.mrf.mxu0
      %v1281 = vadd.f32 0.0, %v1280
      %v1282 = vpop.f32.mrf.mxu0
      %1283 = vmatprep.mubr.f32.mxu0 0.0
      %1284 = vmatmul.mubr.f32.gmra.mxu0 %v1174
      %v1285 = vpop.f32.mrf.mxu0
      %v1286 = vadd.f32 0.0, %v1285
      %v1287 = vpop.f32.mrf.mxu0
      %1288 = vmatprep.mubr.f32.mxu0 0.0
      %1289 = vmatmul.mubr.f32.gmra.mxu0 %v1175
      %v1290 = vpop.f32.mrf.mxu0
      %v1291 = vadd.f32 0.0, %v1290
      %v1292 = vpop.f32.mrf.mxu0
      %1293 = vmatprep.mubr.f32.mxu0 0.0
      %1294 = vmatmul.mubr.f32.gmra.mxu0 %v1176
      %v1295 = vpop.f32.mrf.mxu0
      %v1296 = vadd.f32 0.0, %v1295
      %v1297 = vpop.f32.mrf.mxu0
      %1298 = vdwg.mxu0
      %v1299 = vadd.f32 %v1161, %v1261
      %v1300 = vadd.f32 %v1162, %v1266
      %v1301 = vadd.f32 %v1163, %v1271
      %v1302 = vadd.f32 %v1164, %v1276
      %v1303 = vadd.f32 %v1165, %v1281
      %v1304 = vadd.f32 %v1166, %v1286
      %v1305 = vadd.f32 %v1167, %v1291
      %v1306 = vadd.f32 %v1168, %v1296
      %v1307 = vld [vmem:[%s497 + $0x2] sm:$0xff]
      %v1308 = vld [vmem:[%s497 + $0x12] sm:$0xff]
      %v1309 = vld [vmem:[%s497 + $0x22] sm:$0xff]
      %v1310 = vld [vmem:[%s497 + $0x32] sm:$0xff]
      %v1311 = vld [vmem:[%s497 + $0x42] sm:$0xff]
      %v1312 = vld [vmem:[%s497 + $0x52] sm:$0xff]
      %v1313 = vld [vmem:[%s497 + $0x62] sm:$0xff]
      %v1314 = vld [vmem:[%s497 + $0x72] sm:$0xff]
      %s1315 = scalar_lea.vmem %s3, 640
      %v1316 = vld [vmem:[%s1315] sm:$0xff]
      %v1317 = vld [vmem:[%s1315 + $0x8] sm:$0xff]
      %v1318 = vld [vmem:[%s1315 + $0x10] sm:$0xff]
      %v1319 = vld [vmem:[%s1315 + $0x18] sm:$0xff]
      %v1320 = vld [vmem:[%s1315 + $0x20] sm:$0xff]
      %v1321 = vld [vmem:[%s1315 + $0x28] sm:$0xff]
      %v1322 = vld [vmem:[%s1315 + $0x30] sm:$0xff]
      %v1323 = vld [vmem:[%s1315 + $0x38] sm:$0xff]
      %v1324 = vld [vmem:[%s1315 + $0x40] sm:$0xff]
      %v1325 = vld [vmem:[%s1315 + $0x48] sm:$0xff]
      %v1326 = vld [vmem:[%s1315 + $0x50] sm:$0xff]
      %v1327 = vld [vmem:[%s1315 + $0x58] sm:$0xff]
      %v1328 = vld [vmem:[%s1315 + $0x60] sm:$0xff]
      %v1329 = vld [vmem:[%s1315 + $0x68] sm:$0xff]
      %v1330 = vld [vmem:[%s1315 + $0x70] sm:$0xff]
      %v1331 = vld [vmem:[%s1315 + $0x78] sm:$0xff]
      %1332 = vmatprep.subr.mxu0 0.0
      %1333 = vmatpush1.msra.mxu0 %v1331
      %1334 = vmatprep.subr.mxu0 0.0
      %1335 = vmatpush1.msra.mxu0 %v1330
      %1336 = vmatprep.subr.mxu0 0.0
      %1337 = vmatpush1.msra.mxu0 %v1329
      %1338 = vmatprep.subr.mxu0 0.0
      %1339 = vmatpush1.msra.mxu0 %v1328
      %1340 = vmatprep.subr.mxu0 0.0
      %1341 = vmatpush1.msra.mxu0 %v1327
      %1342 = vmatprep.subr.mxu0 0.0
      %1343 = vmatpush1.msra.mxu0 %v1326
      %1344 = vmatprep.subr.mxu0 0.0
      %1345 = vmatpush1.msra.mxu0 %v1325
      %1346 = vmatprep.subr.mxu0 0.0
      %1347 = vmatpush1.msra.mxu0 %v1324
      %1348 = vmatprep.subr.mxu0 0.0
      %1349 = vmatpush1.msra.mxu0 %v1323
      %1350 = vmatprep.subr.mxu0 0.0
      %1351 = vmatpush1.msra.mxu0 %v1322
      %1352 = vmatprep.subr.mxu0 0.0
      %1353 = vmatpush1.msra.mxu0 %v1321
      %1354 = vmatprep.subr.mxu0 0.0
      %1355 = vmatpush1.msra.mxu0 %v1320
      %1356 = vmatprep.subr.mxu0 0.0
      %1357 = vmatpush1.msra.mxu0 %v1319
      %1358 = vmatprep.subr.mxu0 0.0
      %1359 = vmatpush1.msra.mxu0 %v1318
      %1360 = vmatprep.subr.mxu0 0.0
      %1361 = vmatpush1.msra.mxu0 %v1317
      %1362 = vmatprep.subr.mxu0 0.0
      %1363 = vmatpush1.msra.mxu0 %v1316
      %1364 = vmatprep.subr.mxu0 0.0
      %1365 = vmatpush2.msra.mxu0 0.0
      %1366 = vmatprep.subr.mxu0 0.0
      %1367 = vmatpush2.msra.mxu0 0.0
      %1368 = vmatprep.subr.mxu0 0.0
      %1369 = vmatpush2.msra.mxu0 0.0
      %1370 = vmatprep.subr.mxu0 0.0
      %1371 = vmatpush2.msra.mxu0 0.0
      %1372 = vmatprep.subr.mxu0 0.0
      %1373 = vmatpush2.msra.mxu0 0.0
      %1374 = vmatprep.subr.mxu0 0.0
      %1375 = vmatpush2.msra.mxu0 0.0
      %1376 = vmatprep.subr.mxu0 0.0
      %1377 = vmatpush2.msra.mxu0 0.0
      %1378 = vmatprep.subr.mxu0 0.0
      %1379 = vmatpush2.msra.mxu0 0.0
      %1380 = vmatprep.subr.mxu0 0.0
      %1381 = vmatpush2.msra.mxu0 0.0
      %1382 = vmatprep.subr.mxu0 0.0
      %1383 = vmatpush2.msra.mxu0 0.0
      %1384 = vmatprep.subr.mxu0 0.0
      %1385 = vmatpush2.msra.mxu0 0.0
      %1386 = vmatprep.subr.mxu0 0.0
      %1387 = vmatpush2.msra.mxu0 0.0
      %1388 = vmatprep.subr.mxu0 0.0
      %1389 = vmatpush2.msra.mxu0 0.0
      %1390 = vmatprep.subr.mxu0 0.0
      %1391 = vmatpush2.msra.mxu0 0.0
      %1392 = vmatprep.subr.mxu0 0.0
      %1393 = vmatpush2.msra.mxu0 0.0
      %1394 = vmatprep.subr.mxu0 0.0
      %1395 = vmatpush2.msra.mxu0 0.0
      %1396 = vmatprep.mubr.f32.mxu0 0.0
      %1397 = vmatmul.mubr.f32.gmra.mxu0 %v1307
      %v1398 = vpop.f32.mrf.mxu0
      %v1399 = vadd.f32 0.0, %v1398
      %v1400 = vpop.f32.mrf.mxu0
      %1401 = vmatprep.mubr.f32.mxu0 0.0
      %1402 = vmatmul.mubr.f32.gmra.mxu0 %v1308
      %v1403 = vpop.f32.mrf.mxu0
      %v1404 = vadd.f32 0.0, %v1403
      %v1405 = vpop.f32.mrf.mxu0
      %1406 = vmatprep.mubr.f32.mxu0 0.0
      %1407 = vmatmul.mubr.f32.gmra.mxu0 %v1309
      %v1408 = vpop.f32.mrf.mxu0
      %v1409 = vadd.f32 0.0, %v1408
      %v1410 = vpop.f32.mrf.mxu0
      %1411 = vmatprep.mubr.f32.mxu0 0.0
      %1412 = vmatmul.mubr.f32.gmra.mxu0 %v1310
      %v1413 = vpop.f32.mrf.mxu0
      %v1414 = vadd.f32 0.0, %v1413
      %v1415 = vpop.f32.mrf.mxu0
      %1416 = vmatprep.mubr.f32.mxu0 0.0
      %1417 = vmatmul.mubr.f32.gmra.mxu0 %v1311
      %v1418 = vpop.f32.mrf.mxu0
      %v1419 = vadd.f32 0.0, %v1418
      %v1420 = vpop.f32.mrf.mxu0
      %1421 = vmatprep.mubr.f32.mxu0 0.0
      %1422 = vmatmul.mubr.f32.gmra.mxu0 %v1312
      %v1423 = vpop.f32.mrf.mxu0
      %v1424 = vadd.f32 0.0, %v1423
      %v1425 = vpop.f32.mrf.mxu0
      %1426 = vmatprep.mubr.f32.mxu0 0.0
      %1427 = vmatmul.mubr.f32.gmra.mxu0 %v1313
      %v1428 = vpop.f32.mrf.mxu0
      %v1429 = vadd.f32 0.0, %v1428
      %v1430 = vpop.f32.mrf.mxu0
      %1431 = vmatprep.mubr.f32.mxu0 0.0
      %1432 = vmatmul.mubr.f32.gmra.mxu0 %v1314
      %v1433 = vpop.f32.mrf.mxu0
      %v1434 = vadd.f32 0.0, %v1433
      %v1435 = vpop.f32.mrf.mxu0
      %1436 = vdwg.mxu0
      %v1437 = vadd.f32 %v1299, %v1399
      %v1438 = vadd.f32 %v1300, %v1404
      %v1439 = vadd.f32 %v1301, %v1409
      %v1440 = vadd.f32 %v1302, %v1414
      %v1441 = vadd.f32 %v1303, %v1419
      %v1442 = vadd.f32 %v1304, %v1424
      %v1443 = vadd.f32 %v1305, %v1429
      %v1444 = vadd.f32 %v1306, %v1434
      %s1445 = scalar_lea.vmem [#allocation2], 32
      %v1446 = vld [vmem:[%s1445] sm:$0xff]
      %v1447 = vld [vmem:[%s1445 + $0x10] sm:$0xff]
      %v1448 = vld [vmem:[%s1445 + $0x20] sm:$0xff]
      %v1449 = vld [vmem:[%s1445 + $0x30] sm:$0xff]
      %v1450 = vld [vmem:[%s1445 + $0x40] sm:$0xff]
      %v1451 = vld [vmem:[%s1445 + $0x50] sm:$0xff]
      %v1452 = vld [vmem:[%s1445 + $0x60] sm:$0xff]
      %v1453 = vld [vmem:[%s1445 + $0x70] sm:$0xff]
      %s1454 = scalar_lea.vmem %s3, 768
      %v1455 = vld [vmem:[%s1454] sm:$0xff]
      %v1456 = vld [vmem:[%s1454 + $0x8] sm:$0xff]
      %v1457 = vld [vmem:[%s1454 + $0x10] sm:$0xff]
      %v1458 = vld [vmem:[%s1454 + $0x18] sm:$0xff]
      %v1459 = vld [vmem:[%s1454 + $0x20] sm:$0xff]
      %v1460 = vld [vmem:[%s1454 + $0x28] sm:$0xff]
      %v1461 = vld [vmem:[%s1454 + $0x30] sm:$0xff]
      %v1462 = vld [vmem:[%s1454 + $0x38] sm:$0xff]
      %v1463 = vld [vmem:[%s1454 + $0x40] sm:$0xff]
      %v1464 = vld [vmem:[%s1454 + $0x48] sm:$0xff]
      %v1465 = vld [vmem:[%s1454 + $0x50] sm:$0xff]
      %v1466 = vld [vmem:[%s1454 + $0x58] sm:$0xff]
      %v1467 = vld [vmem:[%s1454 + $0x60] sm:$0xff]
      %v1468 = vld [vmem:[%s1454 + $0x68] sm:$0xff]
      %v1469 = vld [vmem:[%s1454 + $0x70] sm:$0xff]
      %v1470 = vld [vmem:[%s1454 + $0x78] sm:$0xff]
      %1471 = vmatprep.subr.mxu0 0.0
      %1472 = vmatpush1.msra.mxu0 %v1470
      %1473 = vmatprep.subr.mxu0 0.0
      %1474 = vmatpush1.msra.mxu0 %v1469
      %1475 = vmatprep.subr.mxu0 0.0
      %1476 = vmatpush1.msra.mxu0 %v1468
      %1477 = vmatprep.subr.mxu0 0.0
      %1478 = vmatpush1.msra.mxu0 %v1467
      %1479 = vmatprep.subr.mxu0 0.0
      %1480 = vmatpush1.msra.mxu0 %v1466
      %1481 = vmatprep.subr.mxu0 0.0
      %1482 = vmatpush1.msra.mxu0 %v1465
      %1483 = vmatprep.subr.mxu0 0.0
      %1484 = vmatpush1.msra.mxu0 %v1464
      %1485 = vmatprep.subr.mxu0 0.0
      %1486 = vmatpush1.msra.mxu0 %v1463
      %1487 = vmatprep.subr.mxu0 0.0
      %1488 = vmatpush1.msra.mxu0 %v1462
      %1489 = vmatprep.subr.mxu0 0.0
      %1490 = vmatpush1.msra.mxu0 %v1461
      %1491 = vmatprep.subr.mxu0 0.0
      %1492 = vmatpush1.msra.mxu0 %v1460
      %1493 = vmatprep.subr.mxu0 0.0
      %1494 = vmatpush1.msra.mxu0 %v1459
      %1495 = vmatprep.subr.mxu0 0.0
      %1496 = vmatpush1.msra.mxu0 %v1458
      %1497 = vmatprep.subr.mxu0 0.0
      %1498 = vmatpush1.msra.mxu0 %v1457
      %1499 = vmatprep.subr.mxu0 0.0
      %1500 = vmatpush1.msra.mxu0 %v1456
      %1501 = vmatprep.subr.mxu0 0.0
      %1502 = vmatpush1.msra.mxu0 %v1455
      %1503 = vmatprep.subr.mxu0 0.0
      %1504 = vmatpush2.msra.mxu0 0.0
      %1505 = vmatprep.subr.mxu0 0.0
      %1506 = vmatpush2.msra.mxu0 0.0
      %1507 = vmatprep.subr.mxu0 0.0
      %1508 = vmatpush2.msra.mxu0 0.0
      %1509 = vmatprep.subr.mxu0 0.0
      %1510 = vmatpush2.msra.mxu0 0.0
      %1511 = vmatprep.subr.mxu0 0.0
      %1512 = vmatpush2.msra.mxu0 0.0
      %1513 = vmatprep.subr.mxu0 0.0
      %1514 = vmatpush2.msra.mxu0 0.0
      %1515 = vmatprep.subr.mxu0 0.0
      %1516 = vmatpush2.msra.mxu0 0.0
      %1517 = vmatprep.subr.mxu0 0.0
      %1518 = vmatpush2.msra.mxu0 0.0
      %1519 = vmatprep.subr.mxu0 0.0
      %1520 = vmatpush2.msra.mxu0 0.0
      %1521 = vmatprep.subr.mxu0 0.0
      %1522 = vmatpush2.msra.mxu0 0.0
      %1523 = vmatprep.subr.mxu0 0.0
      %1524 = vmatpush2.msra.mxu0 0.0
      %1525 = vmatprep.subr.mxu0 0.0
      %1526 = vmatpush2.msra.mxu0 0.0
      %1527 = vmatprep.subr.mxu0 0.0
      %1528 = vmatpush2.msra.mxu0 0.0
      %1529 = vmatprep.subr.mxu0 0.0
      %1530 = vmatpush2.msra.mxu0 0.0
      %1531 = vmatprep.subr.mxu0 0.0
      %1532 = vmatpush2.msra.mxu0 0.0
      %1533 = vmatprep.subr.mxu0 0.0
      %1534 = vmatpush2.msra.mxu0 0.0
      %1535 = vmatprep.mubr.f32.mxu0 0.0
      %1536 = vmatmul.mubr.f32.gmra.mxu0 %v1446
      %v1537 = vpop.f32.mrf.mxu0
      %v1538 = vadd.f32 0.0, %v1537
      %v1539 = vpop.f32.mrf.mxu0
      %1540 = vmatprep.mubr.f32.mxu0 0.0
      %1541 = vmatmul.mubr.f32.gmra.mxu0 %v1447
      %v1542 = vpop.f32.mrf.mxu0
      %v1543 = vadd.f32 0.0, %v1542
      %v1544 = vpop.f32.mrf.mxu0
      %1545 = vmatprep.mubr.f32.mxu0 0.0
      %1546 = vmatmul.mubr.f32.gmra.mxu0 %v1448
      %v1547 = vpop.f32.mrf.mxu0
      %v1548 = vadd.f32 0.0, %v1547
      %v1549 = vpop.f32.mrf.mxu0
      %1550 = vmatprep.mubr.f32.mxu0 0.0
      %1551 = vmatmul.mubr.f32.gmra.mxu0 %v1449
      %v1552 = vpop.f32.mrf.mxu0
      %v1553 = vadd.f32 0.0, %v1552
      %v1554 = vpop.f32.mrf.mxu0
      %1555 = vmatprep.mubr.f32.mxu0 0.0
      %1556 = vmatmul.mubr.f32.gmra.mxu0 %v1450
      %v1557 = vpop.f32.mrf.mxu0
      %v1558 = vadd.f32 0.0, %v1557
      %v1559 = vpop.f32.mrf.mxu0
      %1560 = vmatprep.mubr.f32.mxu0 0.0
      %1561 = vmatmul.mubr.f32.gmra.mxu0 %v1451
      %v1562 = vpop.f32.mrf.mxu0
      %v1563 = vadd.f32 0.0, %v1562
      %v1564 = vpop.f32.mrf.mxu0
      %1565 = vmatprep.mubr.f32.mxu0 0.0
      %1566 = vmatmul.mubr.f32.gmra.mxu0 %v1452
      %v1567 = vpop.f32.mrf.mxu0
      %v1568 = vadd.f32 0.0, %v1567
      %v1569 = vpop.f32.mrf.mxu0
      %1570 = vmatprep.mubr.f32.mxu0 0.0
      %1571 = vmatmul.mubr.f32.gmra.mxu0 %v1453
      %v1572 = vpop.f32.mrf.mxu0
      %v1573 = vadd.f32 0.0, %v1572
      %v1574 = vpop.f32.mrf.mxu0
      %1575 = vdwg.mxu0
      %v1576 = vadd.f32 %v1437, %v1538
      %v1577 = vadd.f32 %v1438, %v1543
      %v1578 = vadd.f32 %v1439, %v1548
      %v1579 = vadd.f32 %v1440, %v1553
      %v1580 = vadd.f32 %v1441, %v1558
      %v1581 = vadd.f32 %v1442, %v1563
      %v1582 = vadd.f32 %v1443, %v1568
      %v1583 = vadd.f32 %v1444, %v1573
      %v1584 = vld [vmem:[%s1445 + $0x1] sm:$0xff]
      %v1585 = vld [vmem:[%s1445 + $0x11] sm:$0xff]
      %v1586 = vld [vmem:[%s1445 + $0x21] sm:$0xff]
      %v1587 = vld [vmem:[%s1445 + $0x31] sm:$0xff]
      %v1588 = vld [vmem:[%s1445 + $0x41] sm:$0xff]
      %v1589 = vld [vmem:[%s1445 + $0x51] sm:$0xff]
      %v1590 = vld [vmem:[%s1445 + $0x61] sm:$0xff]
      %v1591 = vld [vmem:[%s1445 + $0x71] sm:$0xff]
      %s1592 = scalar_lea.vmem %s3, 896
      %v1593 = vld [vmem:[%s1592] sm:$0xff]
      %v1594 = vld [vmem:[%s1592 + $0x8] sm:$0xff]
      %v1595 = vld [vmem:[%s1592 + $0x10] sm:$0xff]
      %v1596 = vld [vmem:[%s1592 + $0x18] sm:$0xff]
      %v1597 = vld [vmem:[%s1592 + $0x20] sm:$0xff]
      %v1598 = vld [vmem:[%s1592 + $0x28] sm:$0xff]
      %v1599 = vld [vmem:[%s1592 + $0x30] sm:$0xff]
      %v1600 = vld [vmem:[%s1592 + $0x38] sm:$0xff]
      %v1601 = vld [vmem:[%s1592 + $0x40] sm:$0xff]
      %v1602 = vld [vmem:[%s1592 + $0x48] sm:$0xff]
      %v1603 = vld [vmem:[%s1592 + $0x50] sm:$0xff]
      %v1604 = vld [vmem:[%s1592 + $0x58] sm:$0xff]
      %v1605 = vld [vmem:[%s1592 + $0x60] sm:$0xff]
      %v1606 = vld [vmem:[%s1592 + $0x68] sm:$0xff]
      %v1607 = vld [vmem:[%s1592 + $0x70] sm:$0xff]
      %v1608 = vld [vmem:[%s1592 + $0x78] sm:$0xff]
      %1609 = vmatprep.subr.mxu0 0.0
      %1610 = vmatpush1.msra.mxu0 %v1608
      %1611 = vmatprep.subr.mxu0 0.0
      %1612 = vmatpush1.msra.mxu0 %v1607
      %1613 = vmatprep.subr.mxu0 0.0
      %1614 = vmatpush1.msra.mxu0 %v1606
      %1615 = vmatprep.subr.mxu0 0.0
      %1616 = vmatpush1.msra.mxu0 %v1605
      %1617 = vmatprep.subr.mxu0 0.0
      %1618 = vmatpush1.msra.mxu0 %v1604
      %1619 = vmatprep.subr.mxu0 0.0
      %1620 = vmatpush1.msra.mxu0 %v1603
      %1621 = vmatprep.subr.mxu0 0.0
      %1622 = vmatpush1.msra.mxu0 %v1602
      %1623 = vmatprep.subr.mxu0 0.0
      %1624 = vmatpush1.msra.mxu0 %v1601
      %1625 = vmatprep.subr.mxu0 0.0
      %1626 = vmatpush1.msra.mxu0 %v1600
      %1627 = vmatprep.subr.mxu0 0.0
      %1628 = vmatpush1.msra.mxu0 %v1599
      %1629 = vmatprep.subr.mxu0 0.0
      %1630 = vmatpush1.msra.mxu0 %v1598
      %1631 = vmatprep.subr.mxu0 0.0
      %1632 = vmatpush1.msra.mxu0 %v1597
      %1633 = vmatprep.subr.mxu0 0.0
      %1634 = vmatpush1.msra.mxu0 %v1596
      %1635 = vmatprep.subr.mxu0 0.0
      %1636 = vmatpush1.msra.mxu0 %v1595
      %1637 = vmatprep.subr.mxu0 0.0
      %1638 = vmatpush1.msra.mxu0 %v1594
      %1639 = vmatprep.subr.mxu0 0.0
      %1640 = vmatpush1.msra.mxu0 %v1593
      %1641 = vmatprep.subr.mxu0 0.0
      %1642 = vmatpush2.msra.mxu0 0.0
      %1643 = vmatprep.subr.mxu0 0.0
      %1644 = vmatpush2.msra.mxu0 0.0
      %1645 = vmatprep.subr.mxu0 0.0
      %1646 = vmatpush2.msra.mxu0 0.0
      %1647 = vmatprep.subr.mxu0 0.0
      %1648 = vmatpush2.msra.mxu0 0.0
      %1649 = vmatprep.subr.mxu0 0.0
      %1650 = vmatpush2.msra.mxu0 0.0
      %1651 = vmatprep.subr.mxu0 0.0
      %1652 = vmatpush2.msra.mxu0 0.0
      %1653 = vmatprep.subr.mxu0 0.0
      %1654 = vmatpush2.msra.mxu0 0.0
      %1655 = vmatprep.subr.mxu0 0.0
      %1656 = vmatpush2.msra.mxu0 0.0
      %1657 = vmatprep.subr.mxu0 0.0
      %1658 = vmatpush2.msra.mxu0 0.0
      %1659 = vmatprep.subr.mxu0 0.0
      %1660 = vmatpush2.msra.mxu0 0.0
      %1661 = vmatprep.subr.mxu0 0.0
      %1662 = vmatpush2.msra.mxu0 0.0
      %1663 = vmatprep.subr.mxu0 0.0
      %1664 = vmatpush2.msra.mxu0 0.0
      %1665 = vmatprep.subr.mxu0 0.0
      %1666 = vmatpush2.msra.mxu0 0.0
      %1667 = vmatprep.subr.mxu0 0.0
      %1668 = vmatpush2.msra.mxu0 0.0
      %1669 = vmatprep.subr.mxu0 0.0
      %1670 = vmatpush2.msra.mxu0 0.0
      %1671 = vmatprep.subr.mxu0 0.0
      %1672 = vmatpush2.msra.mxu0 0.0
      %1673 = vmatprep.mubr.f32.mxu0 0.0
      %1674 = vmatmul.mubr.f32.gmra.mxu0 %v1584
      %v1675 = vpop.f32.mrf.mxu0
      %v1676 = vadd.f32 0.0, %v1675
      %v1677 = vpop.f32.mrf.mxu0
      %1678 = vmatprep.mubr.f32.mxu0 0.0
      %1679 = vmatmul.mubr.f32.gmra.mxu0 %v1585
      %v1680 = vpop.f32.mrf.mxu0
      %v1681 = vadd.f32 0.0, %v1680
      %v1682 = vpop.f32.mrf.mxu0
      %1683 = vmatprep.mubr.f32.mxu0 0.0
      %1684 = vmatmul.mubr.f32.gmra.mxu0 %v1586
      %v1685 = vpop.f32.mrf.mxu0
      %v1686 = vadd.f32 0.0, %v1685
      %v1687 = vpop.f32.mrf.mxu0
      %1688 = vmatprep.mubr.f32.mxu0 0.0
      %1689 = vmatmul.mubr.f32.gmra.mxu0 %v1587
      %v1690 = vpop.f32.mrf.mxu0
      %v1691 = vadd.f32 0.0, %v1690
      %v1692 = vpop.f32.mrf.mxu0
      %1693 = vmatprep.mubr.f32.mxu0 0.0
      %1694 = vmatmul.mubr.f32.gmra.mxu0 %v1588
      %v1695 = vpop.f32.mrf.mxu0
      %v1696 = vadd.f32 0.0, %v1695
      %v1697 = vpop.f32.mrf.mxu0
      %1698 = vmatprep.mubr.f32.mxu0 0.0
      %1699 = vmatmul.mubr.f32.gmra.mxu0 %v1589
      %v1700 = vpop.f32.mrf.mxu0
      %v1701 = vadd.f32 0.0, %v1700
      %v1702 = vpop.f32.mrf.mxu0
      %1703 = vmatprep.mubr.f32.mxu0 0.0
      %1704 = vmatmul.mubr.f32.gmra.mxu0 %v1590
      %v1705 = vpop.f32.mrf.mxu0
      %v1706 = vadd.f32 0.0, %v1705
      %v1707 = vpop.f32.mrf.mxu0
      %1708 = vmatprep.mubr.f32.mxu0 0.0
      %1709 = vmatmul.mubr.f32.gmra.mxu0 %v1591
      %v1710 = vpop.f32.mrf.mxu0
      %v1711 = vadd.f32 0.0, %v1710
      %v1712 = vpop.f32.mrf.mxu0
      %1713 = vdwg.mxu0
      %v1714 = vadd.f32 %v1576, %v1676
      %v1715 = vadd.f32 %v1577, %v1681
      %v1716 = vadd.f32 %v1578, %v1686
      %v1717 = vadd.f32 %v1579, %v1691
      %v1718 = vadd.f32 %v1580, %v1696
      %v1719 = vadd.f32 %v1581, %v1701
      %v1720 = vadd.f32 %v1582, %v1706
      %v1721 = vadd.f32 %v1583, %v1711
      %v1722 = vld [vmem:[%s1445 + $0x2] sm:$0xff]
      %v1723 = vld [vmem:[%s1445 + $0x12] sm:$0xff]
      %v1724 = vld [vmem:[%s1445 + $0x22] sm:$0xff]
      %v1725 = vld [vmem:[%s1445 + $0x32] sm:$0xff]
      %v1726 = vld [vmem:[%s1445 + $0x42] sm:$0xff]
      %v1727 = vld [vmem:[%s1445 + $0x52] sm:$0xff]
      %v1728 = vld [vmem:[%s1445 + $0x62] sm:$0xff]
      %v1729 = vld [vmem:[%s1445 + $0x72] sm:$0xff]
      %s1730 = scalar_lea.vmem %s3, 1024
      %v1731 = vld [vmem:[%s1730] sm:$0xff]
      %v1732 = vld [vmem:[%s1730 + $0x8] sm:$0xff]
      %v1733 = vld [vmem:[%s1730 + $0x10] sm:$0xff]
      %v1734 = vld [vmem:[%s1730 + $0x18] sm:$0xff]
      %v1735 = vld [vmem:[%s1730 + $0x20] sm:$0xff]
      %v1736 = vld [vmem:[%s1730 + $0x28] sm:$0xff]
      %v1737 = vld [vmem:[%s1730 + $0x30] sm:$0xff]
      %v1738 = vld [vmem:[%s1730 + $0x38] sm:$0xff]
      %v1739 = vld [vmem:[%s1730 + $0x40] sm:$0xff]
      %v1740 = vld [vmem:[%s1730 + $0x48] sm:$0xff]
      %v1741 = vld [vmem:[%s1730 + $0x50] sm:$0xff]
      %v1742 = vld [vmem:[%s1730 + $0x58] sm:$0xff]
      %v1743 = vld [vmem:[%s1730 + $0x60] sm:$0xff]
      %v1744 = vld [vmem:[%s1730 + $0x68] sm:$0xff]
      %v1745 = vld [vmem:[%s1730 + $0x70] sm:$0xff]
      %v1746 = vld [vmem:[%s1730 + $0x78] sm:$0xff]
      %1747 = vmatprep.subr.mxu0 0.0
      %1748 = vmatpush1.msra.mxu0 %v1746
      %1749 = vmatprep.subr.mxu0 0.0
      %1750 = vmatpush1.msra.mxu0 %v1745
      %1751 = vmatprep.subr.mxu0 0.0
      %1752 = vmatpush1.msra.mxu0 %v1744
      %1753 = vmatprep.subr.mxu0 0.0
      %1754 = vmatpush1.msra.mxu0 %v1743
      %1755 = vmatprep.subr.mxu0 0.0
      %1756 = vmatpush1.msra.mxu0 %v1742
      %1757 = vmatprep.subr.mxu0 0.0
      %1758 = vmatpush1.msra.mxu0 %v1741
      %1759 = vmatprep.subr.mxu0 0.0
      %1760 = vmatpush1.msra.mxu0 %v1740
      %1761 = vmatprep.subr.mxu0 0.0
      %1762 = vmatpush1.msra.mxu0 %v1739
      %1763 = vmatprep.subr.mxu0 0.0
      %1764 = vmatpush1.msra.mxu0 %v1738
      %1765 = vmatprep.subr.mxu0 0.0
      %1766 = vmatpush1.msra.mxu0 %v1737
      %1767 = vmatprep.subr.mxu0 0.0
      %1768 = vmatpush1.msra.mxu0 %v1736
      %1769 = vmatprep.subr.mxu0 0.0
      %1770 = vmatpush1.msra.mxu0 %v1735
      %1771 = vmatprep.subr.mxu0 0.0
      %1772 = vmatpush1.msra.mxu0 %v1734
      %1773 = vmatprep.subr.mxu0 0.0
      %1774 = vmatpush1.msra.mxu0 %v1733
      %1775 = vmatprep.subr.mxu0 0.0
      %1776 = vmatpush1.msra.mxu0 %v1732
      %1777 = vmatprep.subr.mxu0 0.0
      %1778 = vmatpush1.msra.mxu0 %v1731
      %1779 = vmatprep.subr.mxu0 0.0
      %1780 = vmatpush2.msra.mxu0 0.0
      %1781 = vmatprep.subr.mxu0 0.0
      %1782 = vmatpush2.msra.mxu0 0.0
      %1783 = vmatprep.subr.mxu0 0.0
      %1784 = vmatpush2.msra.mxu0 0.0
      %1785 = vmatprep.subr.mxu0 0.0
      %1786 = vmatpush2.msra.mxu0 0.0
      %1787 = vmatprep.subr.mxu0 0.0
      %1788 = vmatpush2.msra.mxu0 0.0
      %1789 = vmatprep.subr.mxu0 0.0
      %1790 = vmatpush2.msra.mxu0 0.0
      %1791 = vmatprep.subr.mxu0 0.0
      %1792 = vmatpush2.msra.mxu0 0.0
      %1793 = vmatprep.subr.mxu0 0.0
      %1794 = vmatpush2.msra.mxu0 0.0
      %1795 = vmatprep.subr.mxu0 0.0
      %1796 = vmatpush2.msra.mxu0 0.0
      %1797 = vmatprep.subr.mxu0 0.0
      %1798 = vmatpush2.msra.mxu0 0.0
      %1799 = vmatprep.subr.mxu0 0.0
      %1800 = vmatpush2.msra.mxu0 0.0
      %1801 = vmatprep.subr.mxu0 0.0
      %1802 = vmatpush2.msra.mxu0 0.0
      %1803 = vmatprep.subr.mxu0 0.0
      %1804 = vmatpush2.msra.mxu0 0.0
      %1805 = vmatprep.subr.mxu0 0.0
      %1806 = vmatpush2.msra.mxu0 0.0
      %1807 = vmatprep.subr.mxu0 0.0
      %1808 = vmatpush2.msra.mxu0 0.0
      %1809 = vmatprep.subr.mxu0 0.0
      %1810 = vmatpush2.msra.mxu0 0.0
      %1811 = vmatprep.mubr.f32.mxu0 0.0
      %1812 = vmatmul.mubr.f32.gmra.mxu0 %v1722
      %v1813 = vpop.f32.mrf.mxu0
      %v1814 = vadd.f32 0.0, %v1813
      %v1815 = vpop.f32.mrf.mxu0
      %1816 = vmatprep.mubr.f32.mxu0 0.0
      %1817 = vmatmul.mubr.f32.gmra.mxu0 %v1723
      %v1818 = vpop.f32.mrf.mxu0
      %v1819 = vadd.f32 0.0, %v1818
      %v1820 = vpop.f32.mrf.mxu0
      %1821 = vmatprep.mubr.f32.mxu0 0.0
      %1822 = vmatmul.mubr.f32.gmra.mxu0 %v1724
      %v1823 = vpop.f32.mrf.mxu0
      %v1824 = vadd.f32 0.0, %v1823
      %v1825 = vpop.f32.mrf.mxu0
      %1826 = vmatprep.mubr.f32.mxu0 0.0
      %1827 = vmatmul.mubr.f32.gmra.mxu0 %v1725
      %v1828 = vpop.f32.mrf.mxu0
      %v1829 = vadd.f32 0.0, %v1828
      %v1830 = vpop.f32.mrf.mxu0
      %1831 = vmatprep.mubr.f32.mxu0 0.0
      %1832 = vmatmul.mubr.f32.gmra.mxu0 %v1726
      %v1833 = vpop.f32.mrf.mxu0
      %v1834 = vadd.f32 0.0, %v1833
      %v1835 = vpop.f32.mrf.mxu0
      %1836 = vmatprep.mubr.f32.mxu0 0.0
      %1837 = vmatmul.mubr.f32.gmra.mxu0 %v1727
      %v1838 = vpop.f32.mrf.mxu0
      %v1839 = vadd.f32 0.0, %v1838
      %v1840 = vpop.f32.mrf.mxu0
      %1841 = vmatprep.mubr.f32.mxu0 0.0
      %1842 = vmatmul.mubr.f32.gmra.mxu0 %v1728
      %v1843 = vpop.f32.mrf.mxu0
      %v1844 = vadd.f32 0.0, %v1843
      %v1845 = vpop.f32.mrf.mxu0
      %1846 = vmatprep.mubr.f32.mxu0 0.0
      %1847 = vmatmul.mubr.f32.gmra.mxu0 %v1729
      %v1848 = vpop.f32.mrf.mxu0
      %v1849 = vadd.f32 0.0, %v1848
      %v1850 = vpop.f32.mrf.mxu0
      %1851 = vdwg.mxu0
      %v1852 = vadd.f32 %v1714, %v1814
      %v1853 = vadd.f32 %v1715, %v1819
      %v1854 = vadd.f32 %v1716, %v1824
      %v1855 = vadd.f32 %v1717, %v1829
      %v1856 = vadd.f32 %v1718, %v1834
      %v1857 = vadd.f32 %v1719, %v1839
      %v1858 = vadd.f32 %v1720, %v1844
      %v1859 = vadd.f32 %v1721, %v1849
      %v1860 = vld [vmem:[%s4] sm:$0x1]
      %v1862 = vlaneseq
      %v1863 = vshrl.u32 %v1862, 7
      %v1864 = vsub.s32 0, %v1863
      %v1865 = vrot.slane %v1860, %v1864
      %v1867 = vadd.f32 %v1852, %v1865
      %v1868 = vadd.f32 %v1853, %v1865
      %v1869 = vadd.f32 %v1854, %v1865
      %v1870 = vadd.f32 %v1855, %v1865
      %v1871 = vadd.f32 %v1856, %v1865
      %v1872 = vadd.f32 %v1857, %v1865
      %v1873 = vadd.f32 %v1858, %v1865
      %v1874 = vadd.f32 %v1859, %v1865
      %v1875 = vmax.f32 %v1867, 0.0
      %v1876 = vmax.f32 %v1868, 0.0
      %v1877 = vmax.f32 %v1869, 0.0
      %v1878 = vmax.f32 %v1870, 0.0
      %v1879 = vmax.f32 %v1871, 0.0
      %v1880 = vmax.f32 %v1872, 0.0
      %v1881 = vmax.f32 %v1873, 0.0
      %v1882 = vmax.f32 %v1874, 0.0
      %v1883 = vld [vmem:[%s5] sm:$0xff]
      %v1884 = vld [vmem:[%s5 + $0x8] sm:$0xff]
      %v1885 = vld [vmem:[%s5 + $0x10] sm:$0xff]
      %v1886 = vld [vmem:[%s5 + $0x18] sm:$0xff]
      %v1887 = vld [vmem:[%s5 + $0x20] sm:$0xff]
      %v1888 = vld [vmem:[%s5 + $0x28] sm:$0xff]
      %v1889 = vld [vmem:[%s5 + $0x30] sm:$0xff]
      %v1890 = vld [vmem:[%s5 + $0x38] sm:$0xff]
      %v1891 = vld [vmem:[%s5 + $0x40] sm:$0xff]
      %v1892 = vld [vmem:[%s5 + $0x48] sm:$0xff]
      %v1893 = vld [vmem:[%s5 + $0x50] sm:$0xff]
      %v1894 = vld [vmem:[%s5 + $0x58] sm:$0xff]
      %v1895 = vld [vmem:[%s5 + $0x60] sm:$0xff]
      %v1896 = vld [vmem:[%s5 + $0x68] sm:$0xff]
      %v1897 = vld [vmem:[%s5 + $0x70] sm:$0xff]
      %v1898 = vld [vmem:[%s5 + $0x78] sm:$0xff]
      %v1899 = vld [vmem:[%s6] sm:$0x1]
      %v1901 = vlaneseq
      %v1902 = vshrl.u32 %v1901, 7
      %v1903 = vsub.s32 0, %v1902
      %v1904 = vrot.slane %v1899, %v1903
      %1906 = vmatprep.subr.mxu0 0.0
      %1907 = vmatpush1.msra.mxu0 %v1898
      %1908 = vmatprep.subr.mxu0 0.0
      %1909 = vmatpush1.msra.mxu0 %v1897
      %1910 = vmatprep.subr.mxu0 0.0
      %1911 = vmatpush1.msra.mxu0 %v1896
      %1912 = vmatprep.subr.mxu0 0.0
      %1913 = vmatpush1.msra.mxu0 %v1895
      %1914 = vmatprep.subr.mxu0 0.0
      %1915 = vmatpush1.msra.mxu0 %v1894
      %1916 = vmatprep.subr.mxu0 0.0
      %1917 = vmatpush1.msra.mxu0 %v1893
      %1918 = vmatprep.subr.mxu0 0.0
      %1919 = vmatpush1.msra.mxu0 %v1892
      %1920 = vmatprep.subr.mxu0 0.0
      %1921 = vmatpush1.msra.mxu0 %v1891
      %1922 = vmatprep.subr.mxu0 0.0
      %1923 = vmatpush1.msra.mxu0 %v1890
      %1924 = vmatprep.subr.mxu0 0.0
      %1925 = vmatpush1.msra.mxu0 %v1889
      %1926 = vmatprep.subr.mxu0 0.0
      %1927 = vmatpush1.msra.mxu0 %v1888
      %1928 = vmatprep.subr.mxu0 0.0
      %1929 = vmatpush1.msra.mxu0 %v1887
      %1930 = vmatprep.subr.mxu0 0.0
      %1931 = vmatpush1.msra.mxu0 %v1886
      %1932 = vmatprep.subr.mxu0 0.0
      %1933 = vmatpush1.msra.mxu0 %v1885
      %1934 = vmatprep.subr.mxu0 0.0
      %1935 = vmatpush1.msra.mxu0 %v1884
      %1936 = vmatprep.subr.mxu0 0.0
      %1937 = vmatpush1.msra.mxu0 %v1883
      %1938 = vmatprep.subr.mxu0 0.0
      %1939 = vmatpush2.msra.mxu0 0.0
      %1940 = vmatprep.subr.mxu0 0.0
      %1941 = vmatpush2.msra.mxu0 0.0
      %1942 = vmatprep.subr.mxu0 0.0
      %1943 = vmatpush2.msra.mxu0 0.0
      %1944 = vmatprep.subr.mxu0 0.0
      %1945 = vmatpush2.msra.mxu0 0.0
      %1946 = vmatprep.subr.mxu0 0.0
      %1947 = vmatpush2.msra.mxu0 0.0
      %1948 = vmatprep.subr.mxu0 0.0
      %1949 = vmatpush2.msra.mxu0 0.0
      %1950 = vmatprep.subr.mxu0 0.0
      %1951 = vmatpush2.msra.mxu0 0.0
      %1952 = vmatprep.subr.mxu0 0.0
      %1953 = vmatpush2.msra.mxu0 0.0
      %1954 = vmatprep.subr.mxu0 0.0
      %1955 = vmatpush2.msra.mxu0 0.0
      %1956 = vmatprep.subr.mxu0 0.0
      %1957 = vmatpush2.msra.mxu0 0.0
      %1958 = vmatprep.subr.mxu0 0.0
      %1959 = vmatpush2.msra.mxu0 0.0
      %1960 = vmatprep.subr.mxu0 0.0
      %1961 = vmatpush2.msra.mxu0 0.0
      %1962 = vmatprep.subr.mxu0 0.0
      %1963 = vmatpush2.msra.mxu0 0.0
      %1964 = vmatprep.subr.mxu0 0.0
      %1965 = vmatpush2.msra.mxu0 0.0
      %1966 = vmatprep.subr.mxu0 0.0
      %1967 = vmatpush2.msra.mxu0 0.0
      %1968 = vmatprep.subr.mxu0 0.0
      %1969 = vmatpush2.msra.mxu0 0.0
      %1970 = vmatprep.mubr.f32.mxu0 0.0
      %1971 = vmatmul.mubr.f32.gmra.mxu0 %v1875
      %v1972 = vpop.f32.mrf.mxu0
      %v1973 = vadd.f32 %v1904, %v1972
      %v1974 = vpop.f32.mrf.mxu0
      %1975 = vmatprep.mubr.f32.mxu0 0.0
      %1976 = vmatmul.mubr.f32.gmra.mxu0 %v1876
      %v1977 = vpop.f32.mrf.mxu0
      %v1978 = vadd.f32 %v1904, %v1977
      %v1979 = vpop.f32.mrf.mxu0
      %1980 = vmatprep.mubr.f32.mxu0 0.0
      %1981 = vmatmul.mubr.f32.gmra.mxu0 %v1877
      %v1982 = vpop.f32.mrf.mxu0
      %v1983 = vadd.f32 %v1904, %v1982
      %v1984 = vpop.f32.mrf.mxu0
      %1985 = vmatprep.mubr.f32.mxu0 0.0
      %1986 = vmatmul.mubr.f32.gmra.mxu0 %v1878
      %v1987 = vpop.f32.mrf.mxu0
      %v1988 = vadd.f32 %v1904, %v1987
      %v1989 = vpop.f32.mrf.mxu0
      %1990 = vmatprep.mubr.f32.mxu0 0.0
      %1991 = vmatmul.mubr.f32.gmra.mxu0 %v1879
      %v1992 = vpop.f32.mrf.mxu0
      %v1993 = vadd.f32 %v1904, %v1992
      %v1994 = vpop.f32.mrf.mxu0
      %1995 = vmatprep.mubr.f32.mxu0 0.0
      %1996 = vmatmul.mubr.f32.gmra.mxu0 %v1880
      %v1997 = vpop.f32.mrf.mxu0
      %v1998 = vadd.f32 %v1904, %v1997
      %v1999 = vpop.f32.mrf.mxu0
      %2000 = vmatprep.mubr.f32.mxu0 0.0
      %2001 = vmatmul.mubr.f32.gmra.mxu0 %v1881
      %v2002 = vpop.f32.mrf.mxu0
      %v2003 = vadd.f32 %v1904, %v2002
      %v2004 = vpop.f32.mrf.mxu0
      %2005 = vmatprep.mubr.f32.mxu0 0.0
      %2006 = vmatmul.mubr.f32.gmra.mxu0 %v1882
      %v2007 = vpop.f32.mrf.mxu0
      %v2008 = vadd.f32 %v1904, %v2007
      %v2009 = vpop.f32.mrf.mxu0
      %2010 = vdwg.mxu0
      %v2011 = vadd.f32 %v1973, %v596
      %v2012 = vadd.f32 %v1978, %v601
      %v2013 = vadd.f32 %v1983, %v606
      %v2014 = vadd.f32 %v1988, %v611
      %v2015 = vadd.f32 %v1993, %v616
      %v2016 = vadd.f32 %v1998, %v621
      %v2017 = vadd.f32 %v2003, %v626
      %v2018 = vadd.f32 %v2008, %v631
      %v2019 = vmax.f32 %v2011, 0.0
      %v2020 = vmax.f32 %v2012, 0.0
      %v2021 = vmax.f32 %v2013, 0.0
      %v2022 = vmax.f32 %v2014, 0.0
      %v2023 = vmax.f32 %v2015, 0.0
      %v2024 = vmax.f32 %v2016, 0.0
      %v2025 = vmax.f32 %v2017, 0.0
      %v2026 = vmax.f32 %v2018, 0.0
      %2027 = vst [vmem:[%s332] sm:$0xff] %v2019
      %2028 = vst [vmem:[%s332 + $0x8] sm:$0xff] %v2020
      %2029 = vst [vmem:[%s332 + $0x10] sm:$0xff] %v2021
      %2030 = vst [vmem:[%s332 + $0x18] sm:$0xff] %v2022
      %2031 = vst [vmem:[%s332 + $0x20] sm:$0xff] %v2023
      %2032 = vst [vmem:[%s332 + $0x28] sm:$0xff] %v2024
      %2033 = vst [vmem:[%s332 + $0x30] sm:$0xff] %v2025
      %2034 = vst [vmem:[%s332 + $0x38] sm:$0xff] %v2026
      %p2035 = scmp.lt.s32.totalorder %s20, 1
      %s2036 = scalar_select %p2035, %s20, 1
      %s2037 = smul.addr %s2036, 8
      %s2038 = smul.addr %s2037, 8
      %s2039 = scalar_lea.vmem %s9, %s2038
      // Predicated region
      $region57: #{bottleneck_forward.1} parent=55 // pred_check
        %p2040 = pneg %p232
      $region58: #{bottleneck_forward.1} parent=55 // pred_check_branch
        %2042 = sbr.rel (%p2040) target = $region60
      $region59: #{bottleneck_forward.1} parent=55 // pred_region
        _
      $region60: #{bottleneck_forward.1} parent=55 // pred_fallthru
        _
    $region56: #{bottleneck_forward.1} parent=5 // pred_fallthru
      _
    %p2043 = scmp.le.s32.totalorder 2, %s15
    // Predicated region
    $region61: #{bottleneck_forward.1} parent=5 // pred_check
      %p2044 = pneg %p2043
    $region62: #{bottleneck_forward.1} parent=5 // pred_check_branch
      %2046 = sbr.rel (%p2044) target = $region64
    $region63: #{bottleneck_forward.1} parent=5 // pred_region
      %s2047 = ssub.s32 %s15, 2
      // Predicated region
      $region65: #{bottleneck_forward.1} parent=63 // pred_check
        %p2048 = pneg %p238
      $region66: #{bottleneck_forward.1} parent=63 // pred_check_branch
        %2050 = sbr.rel (%p2048) target = $region68
      $region67: #{bottleneck_forward.1} parent=63 // pred_region
        %p2051 = scmp.lt.s32.totalorder %s21, 1
        %s2052 = scalar_select %p2051, %s21, 1
        %s2053 = smul.addr %s2052, 8
        %s2054 = smul.addr %s2053, 8
        %s2055 = scalar_lea.vmem %s9, %s2054
      $region68: #{bottleneck_forward.1} parent=63 // pred_fallthru
        _
    $region64: #{bottleneck_forward.1} parent=5 // pred_fallthru
      _
  $region6: #{bottleneck_forward.1} parent=0 // loop_footer
    %s19 = sadd.s32 1, %s15
  $region7: #{bottleneck_forward.1} parent=0 // loop_footer_branch
    %14 = sbr.rel target = $region3
  $region8: #{bottleneck_forward.1} parent=0 // loop_exit
    _

</llo_original>
